<compile_context>
chip_gen: v5e
topology: v5e:2x2
jax: 0.10.0
libtpu: 0.0.40
codegen_flags: <defaults>
</compile_context>

<pallas_src>
import jax
import jax.numpy as jnp
from jax.experimental import pallas as pl
from jax.experimental.pallas import tpu as pltpu

# ---------------- WN config ----------------
N_IN        = 4        # n_in_channels
COND_IN     = 8        # cond_in_channels
N_CH        = 64       # dg_wn_n_channels   (multiple of 2)
N_LAYERS    = 2        # dg_wn_n_layers
KSIZE       = 3        # dg_wn_kernel_size  (odd)
COND_K      = 3        # dg_wn_cond_kernel_size
COND_LAYERS = 1        # dg_wn_cond_layers  (> 0)
COND_HIDDEN = 32       # dg_wn_cond_hidden_channels (unused when COND_LAYERS == 1)
DILATIONS   = [2 ** i for i in range(N_LAYERS)]   # dg_wn_dilations_w = None

COND_PAD  = (COND_K - 1) // 2
COND_OUT  = 2 * N_CH * N_LAYERS
COND_DIMS = [COND_IN] + [COND_HIDDEN] * (COND_LAYERS - 1) + [COND_OUT]

# NOTE: the wrapper pre-builds the cond K-tap slab (single cond layer, as configured).
assert COND_LAYERS == 1

# Tiling constants.
HALO    = 8                      # per-side recompute halo, >= sum of per-layer pads (=3)
SUBPAD  = 16                     # bf16-native-tile halo in the conv-staging scratch
assert SUBPAD >= max(d * (KSIZE - 1) // 2 for d in DILATIONS)
assert HALO >= sum(d * (KSIZE - 1) // 2 for d in DILATIONS)

B = 2
T = 16


# ---------------- packed-parameter layout ----------------
def _align(x, a):
    return ((x + a - 1) // a) * a


OUT_PAD    = 128                               # end-conv output padded to 128 lanes
IN_LANES   = 32                                # 4 spect + 24 cond taps + 4 zero pad
assert N_IN + COND_K * COND_IN <= IN_LANES
COND_COL0  = 128                               # cond output starts at a 128-lane boundary
FUSED_COLS = COND_COL0 + COND_OUT              # [0,64) start | [64,128) pad | [128,384) cond

# Weight slab rows (every segment start is 16-row aligned for bf16 sublane packing).
_r = 0
ROW_FUSED = _r; _r = _align(_r + IN_LANES, 16)
ROW_IN = []
for _i in range(N_LAYERS):
    ROW_IN.append(_r); _r = _align(_r + KSIZE * N_CH, 16)
ROW_RES = []
for _i in range(N_LAYERS):
    ROW_RES.append(_r); _r = _align(_r + N_CH, 16)
ROW_END = _r; _r = _align(_r + N_CH, 16)
W_ROWS = _align(_r, 16)
W_COLS = FUSED_COLS                            # 384 = 3 * 128

# Bias slab columns (every segment start is 128-lane aligned).
_c = 0
COL_FUSED_B = _c; _c = _align(_c + FUSED_COLS, 128)
COL_IN_B = []
for _i in range(N_LAYERS):
    COL_IN_B.append(_c); _c = _align(_c + 2 * N_CH, 128)
COL_RES_B = []
for _i in range(N_LAYERS):
    COL_RES_B.append(_c); _c = _align(_c + 2 * N_CH, 128)
COL_END_B = _c; _c = _align(_c + OUT_PAD, 128)
B_COLS = _c


def pack_params(p):
    """Pack all weights into one bf16 slab and all biases into one f32 slab."""
    wsl = jnp.zeros((W_ROWS, W_COLS), jnp.float32)

    # Fused (block-diagonal) start + cond weights.
    wsl = wsl.at[ROW_FUSED:ROW_FUSED + N_IN, 0:N_CH].set(p['start_w'])
    cw = p['cond'][0][0].reshape(COND_K * COND_IN, COND_OUT)           # k-major rows
    wsl = wsl.at[ROW_FUSED + N_IN:ROW_FUSED + N_IN + COND_K * COND_IN,
                 COND_COL0:COND_COL0 + COND_OUT].set(cw)
    for i in range(N_LAYERS):
        iw = p['in_w'][i].reshape(KSIZE * N_CH, 2 * N_CH)              # k-major rows
        wsl = wsl.at[ROW_IN[i]:ROW_IN[i] + KSIZE * N_CH, 0:2 * N_CH].set(iw)
    for i in range(N_LAYERS):
        rw = p['res'][i][0]                                            # (64,128) or (64,64)
        wsl = wsl.at[ROW_RES[i]:ROW_RES[i] + N_CH, 0:rw.shape[1]].set(rw)
    wsl = wsl.at[ROW_END:ROW_END + N_CH, 0:2 * N_IN].set(p['end_w'])
    wslab = wsl.astype(jnp.bfloat16)

    bsl = jnp.zeros((1, B_COLS), jnp.float32)
    bsl = bsl.at[0, COL_FUSED_B:COL_FUSED_B + N_CH].set(p['start_b'].reshape(-1))
    bsl = bsl.at[0, COL_FUSED_B + COND_COL0:
                 COL_FUSED_B + COND_COL0 + COND_OUT].set(p['cond'][0][1].reshape(-1))
    for i in range(N_LAYERS):
        bsl = bsl.at[0, COL_IN_B[i]:COL_IN_B[i] + 2 * N_CH].set(p['in_b'][i].reshape(-1))
    for i in range(N_LAYERS):
        rb = p['res'][i][1].reshape(-1)
        bsl = bsl.at[0, COL_RES_B[i]:COL_RES_B[i] + rb.shape[0]].set(rb)
    bsl = bsl.at[0, COL_END_B:COL_END_B + 2 * N_IN].set(p['end_b'].reshape(-1))
    return wslab, bsl


# ---------------- Pallas kernel ----------------
def _make_wn_kernel(tile_t, t_total):
    et = tile_t + 2 * HALO
    f32 = jnp.float32
    bf16 = jnp.bfloat16

    def kernel(x_ref, w_ref, b_ref, out_ref, hpad_ref):
        j = pl.program_id(1)                                           # time-tile index

        def wseg(r0, nrows, ncols):
            return w_ref[pl.ds(r0, nrows), pl.ds(0, ncols)]            # bf16

        def bseg(c0, ncols):
            return b_ref[pl.ds(0, 1), pl.ds(c0, ncols)]                # (1, ncols) f32

        # Zero the conv halo rows of the staging scratch (full bf16-tile-aligned stores).
        hpad_ref[0:SUBPAD, :] = jnp.zeros((SUBPAD, N_CH), bf16)
        hpad_ref[SUBPAD + et:SUBPAD + et + SUBPAD, :] = jnp.zeros((SUBPAD, N_CH), bf16)

        x = x_ref[0, 0]                                                # (ET, 32) bf16

        # --- fused start(1x1) + cond(K-tap) matmul (block-diagonal weights) ---
        fused = jnp.dot(x, wseg(ROW_FUSED, IN_LANES, FUSED_COLS),
                        preferred_element_type=f32) + bseg(COL_FUSED_B, FUSED_COLS)
        h = fused[:, :N_CH]                                            # start-conv output
        # cond_out lives at 128-aligned slices fused[:, 128+i*128 : 128+(i+1)*128]
        # (dg_wn_cond_act_func == 'none' -> no activation)

        # Validity of extended rows w.r.t. the real sequence [0, T): reproduces the
        # zero padding of the dilated convs at sequence boundaries / tile tails.
        e = jax.lax.broadcasted_iota(jnp.int32, (et, 1), 0)
        g = j * tile_t - HALO + e
        valid = jnp.logical_and(g >= 0, g < t_total)

        output = jnp.zeros((et, N_CH), f32)                            # merge_res_skip=False

        # --- WN layers (halo rows recomputed, central TILE_T rows exact) ---
        for i in range(N_LAYERS):
            d = DILATIONS[i]
            pad = d * (KSIZE - 1) // 2
            # Stage the (masked) residual stream into the zero-haloed scratch, bf16.
            hpad_ref[SUBPAD:SUBPAD + et, :] = jnp.where(valid, h, 0.0).astype(bf16)
            # K shifted windows -> one (ET, K*C) slab -> single MXU matmul.
            wins = [hpad_ref[pl.ds(SUBPAD - pad + k * d, et), :] for k in range(KSIZE)]
            slab = jnp.concatenate(wins, axis=-1)                      # (ET, 192) bf16
            z = jnp.dot(slab, wseg(ROW_IN[i], KSIZE * N_CH, 2 * N_CH),
                        preferred_element_type=f32) + bseg(COL_IN_B[i], 2 * N_CH)
            # GTU(in_layer(spect), cond_slice)   (f32 VPU math; bf16 only at MXU inputs)
            in_act = z + fused[:, COND_COL0 + i * 2 * N_CH:COND_COL0 + (i + 1) * 2 * N_CH]
            acts = jnp.tanh(in_act[:, :N_CH]) * jax.nn.sigmoid(in_act[:, N_CH:])
            rs = jnp.dot(acts.astype(bf16), wseg(ROW_RES[i], N_CH, 2 * N_CH),
                         preferred_element_type=f32) + bseg(COL_RES_B[i], 2 * N_CH)
            if i < N_LAYERS - 1:                                       # res_skip, not merged
                h = h + rs[:, :N_CH]
                output = output + rs[:, N_CH:]
            else:                                                      # last layer: 64 real cols
                output = output + rs[:, :N_CH]

        # --- end: 1x1 conv (zero-initialized in the module); 128-lane padded store ---
        out = jnp.dot(output.astype(bf16), wseg(ROW_END, N_CH, OUT_PAD),
                      preferred_element_type=f32) + bseg(COL_END_B, OUT_PAD)
        out_ref[0] = out[HALO:HALO + tile_t, :]                        # keep central rows

    return kernel


# ---------------- wrapper ----------------
def wn_forward(spect_ncl, cond_ncl, params, tile_t=256):
    b_, cin, t_ = spect_ncl.shape
    assert cin == N_IN
    f32, bf16 = jnp.float32, jnp.bfloat16

    # Static tile size: multiple of 16, no larger than (T rounded up to 16).
    tile_t = int(tile_t)
    tile_t = max(16, min(tile_t, _align(t_, 16)))
    tile_t = (tile_t // 16) * 16
    nt = (t_ + tile_t - 1) // tile_t
    t_cover = nt * tile_t
    et = tile_t + 2 * HALO

    # NCL -> (B, T, C); time on sublanes, channels on lanes.
    spect = jnp.transpose(spect_ncl, (0, 2, 1)).astype(f32)            # (B, T, N_IN)
    cond = jnp.transpose(cond_ncl, (0, 2, 1)).astype(f32)              # (B, T, COND_IN)

    # Cond K-tap slab (per-sequence zero padding) + spect, fused into one 32-lane input.
    cpad = jnp.pad(cond, ((0, 0), (COND_PAD, COND_PAD), (0, 0)))
    taps = jnp.concatenate([cpad[:, k:k + t_, :] for k in range(COND_K)], axis=-1)
    slab = jnp.concatenate(
        [spect, taps, jnp.zeros((b_, t_, IN_LANES - N_IN - COND_K * COND_IN), f32)],
        axis=-1)                                                       # (B, T, 32)

    # Halo-extended, possibly tail-padded time tiles: (B, NT, ET, 32).
    slab = jnp.pad(slab, ((0, 0), (HALO, HALO + t_cover - t_), (0, 0)))
    tiles = jnp.stack([slab[:, j * tile_t:j * tile_t + et, :] for j in range(nt)], axis=1)
    tiles = tiles.astype(bf16)

    wslab, bslab = pack_params(params)

    out = pl.pallas_call(
        _make_wn_kernel(tile_t, t_),
        out_shape=jax.ShapeDtypeStruct((b_, t_cover, OUT_PAD), f32),
        grid=(b_, nt),
        in_specs=[
            pl.BlockSpec((1, 1, et, IN_LANES), lambda bi, ji: (bi, ji, 0, 0)),
            pl.BlockSpec((W_ROWS, W_COLS), lambda bi, ji: (0, 0)),     # resident weights
            pl.BlockSpec((1, B_COLS), lambda bi, ji: (0, 0)),          # resident biases
        ],
        out_specs=pl.BlockSpec((1, tile_t, OUT_PAD), lambda bi, ji: (bi, ji, 0)),
        scratch_shapes=[pltpu.VMEM((SUBPAD + et + SUBPAD, N_CH), jnp.bfloat16)],
        compiler_params=pltpu.CompilerParams(
            dimension_semantics=("parallel", "parallel"),
            vmem_limit_bytes=32 * 1024 * 1024),
    )(tiles, wslab, bslab)

    out_btc = out[:, :t_, :2 * N_IN]
    out_ncl = jnp.transpose(out_btc, (0, 2, 1))                        # (B, 2*N_IN, T)
    return out_ncl[:, :N_IN, :], out_ncl[:, N_IN:, :]                  # .chunk(2, dim=1)


# ---------------- deterministic parameter init ----------------
def init_params(key):
    ks = jax.random.split(key, 16)

    def w(k, shape, fan_in):
        return (jax.random.normal(k, shape, jnp.float32) / jnp.sqrt(fan_in)).astype(jnp.float32)

    p = {}
    p['start_w'] = w(ks[0], (N_IN, N_CH), N_IN)
    p['start_b'] = 0.1 * w(ks[1], (1, N_CH), 1.0)
    kidx = 2
    cond = []
    for li in range(COND_LAYERS):
        cin, cout = COND_DIMS[li], COND_DIMS[li + 1]
        cond.append((w(ks[kidx], (COND_K, cin, cout), cin * COND_K),
                     0.1 * w(ks[kidx + 1], (1, cout), 1.0)))
        kidx += 2
    p['cond'] = cond
    p['in_w'] = w(ks[kidx], (N_LAYERS, KSIZE, N_CH, 2 * N_CH), N_CH * KSIZE); kidx += 1
    p['in_b'] = 0.1 * w(ks[kidx], (N_LAYERS, 1, 2 * N_CH), 1.0); kidx += 1
    res = []
    for i in range(N_LAYERS):
        rch = 2 * N_CH if i < N_LAYERS - 1 else N_CH
        res.append((w(ks[kidx], (N_CH, rch), N_CH), 0.1 * w(ks[kidx + 1], (1, rch), 1.0)))
        kidx += 2
    p['res'] = res
    # `end` conv: weight & bias zero-initialized exactly as in the module
    p['end_w'] = jnp.zeros((N_CH, 2 * N_IN), jnp.float32)
    p['end_b'] = jnp.zeros((1, 2 * N_IN), jnp.float32)
    return p


# ---------------- pure-JAX reference (for validation) ----------------
def _conv1d(x, w_kio, bias, dilation=1, padding=0):
    # x: (B, Cin, T); w_kio: (K, Cin, Cout) -> torch OIH layout
    w_oih = jnp.transpose(w_kio, (2, 1, 0))
    y = jax.lax.conv_general_dilated(
        x, w_oih, window_strides=(1,), padding=[(padding, padding)],
        rhs_dilation=(dilation,), dimension_numbers=('NCH', 'OIH', 'NCH'))
    return y + bias.reshape(1, -1, 1)


def ref_forward(spect, cond, p):
    h = _conv1d(spect, p['start_w'][None], p['start_b'])
    output = jnp.zeros_like(h)
    c = cond
    for (w, bb) in p['cond']:
        c = _conv1d(c, w, bb, padding=COND_PAD)
    for i in range(N_LAYERS):
        d = DILATIONS[i]
        pad = d * (KSIZE - 1) // 2
        z = _conv1d(h, p['in_w'][i], p['in_b'][i], dilation=d, padding=pad)
        in_act = z + c[:, i * 2 * N_CH:(i + 1) * 2 * N_CH, :]
        acts = jnp.tanh(in_act[:, :N_CH]) * jax.nn.sigmoid(in_act[:, N_CH:])
        rw, rb = p['res'][i]
        rs = _conv1d(acts, rw[None], rb)
        if i < N_LAYERS - 1:
            h = h + rs[:, :N_CH]
            output = output + rs[:, N_CH:]
        else:
            output = output + rs
    out = _conv1d(output, p['end_w'][None], p['end_b'])
    return out[:, :N_IN, :], out[:, N_IN:, :]


if __name__ == "__main__":
    key = jax.random.PRNGKey(0)
    kp, ksx, kcx, kv = jax.random.split(key, 4)
    params = init_params(kp)

    fwd = jax.jit(wn_forward, static_argnames=("tile_t",))

    # Validation uses non-zero `end` weights (the real module zero-inits them, which
    # would make comparisons trivially zero).  Params/inputs are rounded through bf16
    # for both kernel and reference so the only remaining difference is bf16
    # intermediate precision on the kernel's MXU path.
    def q(a):
        return a.astype(jnp.bfloat16).astype(jnp.float32)

    vparams = dict(params)
    vparams['end_w'] = jax.random.normal(kv, (N_CH, 2 * N_IN), jnp.float32) / jnp.sqrt(N_CH)
    vparams['end_b'] = jnp.full((1, 2 * N_IN), 0.01, jnp.float32)
    vparams_q = jax.tree_util.tree_map(q, vparams)

    # --- validation 1: single-tile path (B=2, T=16) ---
    spect = jax.random.normal(ksx, (B, N_IN, T), jnp.float32)
    cond = jax.random.normal(kcx, (B, COND_IN, T), jnp.float32)
    spect_q, cond_q = q(spect), q(cond)
    a_p, b_p = fwd(spect_q, cond_q, vparams_q)
    a_r, b_r = ref_forward(spect_q, cond_q, vparams_q)
    assert jnp.allclose(a_p, a_r, rtol=5e-2, atol=5e-2), float(jnp.max(jnp.abs(a_p - a_r)))
    assert jnp.allclose(b_p, b_r, rtol=5e-2, atol=5e-2), float(jnp.max(jnp.abs(b_p - b_r)))

    # --- validation 2: multi-tile halo path (B=2, T=40, 3 tiles of 16 + tail padding) ---
    k2a, k2b = jax.random.split(kv)
    T2 = 40
    spect2 = q(jax.random.normal(k2a, (B, N_IN, T2), jnp.float32))
    cond2 = q(jax.random.normal(k2b, (B, COND_IN, T2), jnp.float32))
    a_p2, b_p2 = fwd(spect2, cond2, vparams_q, tile_t=16)
    a_r2, b_r2 = ref_forward(spect2, cond2, vparams_q)
    assert jnp.allclose(a_p2, a_r2, rtol=5e-2, atol=5e-2), float(jnp.max(jnp.abs(a_p2 - a_r2)))
    assert jnp.allclose(b_p2, b_r2, rtol=5e-2, atol=5e-2), float(jnp.max(jnp.abs(b_p2 - b_r2)))

    # --- real module semantics (zero-initialized end conv -> zero outputs, as in PyTorch) ---
    out_a, out_b = fwd(spect, cond, params)
    jax.block_until_ready((out_a, out_b))
    assert out_a.shape == (B, N_IN, T) and out_b.shape == (B, N_IN, T)
    print("KERNEL_OK")
</pallas_src>

<mosaic_0001>
module attributes {stable_mosaic.version = 11 : i64} {
  func.func @kernel(%arg0: i32, %arg1: i32, %arg2: memref<1x1x32x32xbf16, #tpu.memory_space<vmem>>, %arg3: memref<608x384xbf16, #tpu.memory_space<vmem>>, %arg4: memref<1x1024xf32, #tpu.memory_space<vmem>>, %arg5: memref<1x16x128xf32, #tpu.memory_space<vmem>>, %arg6: memref<64x64xbf16, #tpu.memory_space<vmem>>) attributes {dimension_semantics = [#tpu.dimension_semantics<parallel>, #tpu.dimension_semantics<parallel>], iteration_bounds = array<i64: 2, 1>, scalar_prefetch = 0 : i64, scratch_operands = 1 : i64, tpu.core_type = #tpu.core_type<tc>, window_params = [{transform_indices = @transform_0, window_bounds = array<i64: 1, 1, 32, 32>}, {pipeline_mode = #tpu.pipeline_mode<synchronous>, transform_indices = @transform_1, window_bounds = array<i64: 608, 384>}, {pipeline_mode = #tpu.pipeline_mode<synchronous>, transform_indices = @transform_2, window_bounds = array<i64: 1, 1024>}, {transform_indices = @transform_3, window_bounds = array<i64: 1, 16, 128>}]} {
    %cst = arith.constant 0.000000e+00 : bf16
    %0 = vector.broadcast %cst : bf16 to vector<16x64xbf16>
    %c0 = arith.constant 0 : index
    %c0_0 = arith.constant 0 : index
    %1 = vector.load %arg6[%c0, %c0_0] : memref<64x64xbf16, #tpu.memory_space<vmem>>, vector<16x64xbf16>
    tpu.vector_store %arg6[%c0, %c0_0], %0 {strides = array<i32>} : memref<64x64xbf16, #tpu.memory_space<vmem>>, vector<16x64xbf16>,
    %cst_1 = arith.constant 0.000000e+00 : bf16
    %2 = vector.broadcast %cst_1 : bf16 to vector<16x64xbf16>
    %c48 = arith.constant 48 : index
    %c0_2 = arith.constant 0 : index
    %3 = vector.load %arg6[%c48, %c0_2] : memref<64x64xbf16, #tpu.memory_space<vmem>>, vector<16x64xbf16>
    tpu.vector_store %arg6[%c48, %c0_2], %2 {strides = array<i32>} : memref<64x64xbf16, #tpu.memory_space<vmem>>, vector<16x64xbf16>,
    %c0_3 = arith.constant 0 : index
    %c0_4 = arith.constant 0 : index
    %c0_5 = arith.constant 0 : index
    %c0_6 = arith.constant 0 : index
    %4 = vector.load %arg2[%c0_3, %c0_4, %c0_5, %c0_6] : memref<1x1x32x32xbf16, #tpu.memory_space<vmem>>, vector<1x1x32x32xbf16>
    %5 = vector.shape_cast %4 : vector<1x1x32x32xbf16> to vector<32x32xbf16>
    %c0_7 = arith.constant 0 : index
    %c0_8 = arith.constant 0 : index
    %6 = vector.load %arg3[%c0_7, %c0_8] : memref<608x384xbf16, #tpu.memory_space<vmem>>, vector<32x384xbf16>
    %cst_9 = arith.constant dense<0.000000e+00> : vector<32x384xf32>
    %7 = tpu.matmul %5, %6, %cst_9 {dimension_numbers = #tpu.dot_dimension_numbers<[1], [0], [0], [1], [0, 0, 1, 1], [], []>} : vector<32x32xbf16>, vector<32x384xbf16>, vector<32x384xf32> -> vector<32x384xf32>
    %c0_10 = arith.constant 0 : index
    %c0_11 = arith.constant 0 : index
    %8 = vector.load %arg4[%c0_10, %c0_11] : memref<1x1024xf32, #tpu.memory_space<vmem>>, vector<1x384xf32>
    %9 = vector.broadcast %8 : vector<1x384xf32> to vector<32x384xf32>
    %10 = arith.addf %7, %9 : vector<32x384xf32>
    %11 = vector.extract_strided_slice %10 {offsets = [0, 0], sizes = [32, 64], strides = [1, 1]} : vector<32x384xf32> to vector<32x64xf32>
    %12 = tpu.iota {dimensions = array<i32: 0>} : vector<32x1xi32>
    %c16_i32 = arith.constant 16 : i32
    %13 = arith.muli %arg1, %c16_i32 : i32
    %c8_i32 = arith.constant 8 : i32
    %14 = arith.subi %13, %c8_i32 : i32
    %15 = vector.broadcast %14 : i32 to vector<32x1xi32>
    %16 = arith.addi %15, %12 : vector<32x1xi32>
    %c0_i32 = arith.constant 0 : i32
    %17 = vector.broadcast %c0_i32 : i32 to vector<32x1xi32>
    %18 = arith.cmpi sge, %16, %17 : vector<32x1xi32>
    %c16_i32_12 = arith.constant 16 : i32
    %19 = vector.broadcast %c16_i32_12 : i32 to vector<32x1xi32>
    %20 = arith.cmpi slt, %16, %19 : vector<32x1xi32>
    %21 = arith.andi %18, %20 : vector<32x1xi1>
    %cst_13 = arith.constant 0.000000e+00 : f32
    %22 = vector.broadcast %cst_13 : f32 to vector<32x64xf32>
    %cst_14 = arith.constant 0.000000e+00 : f32
    %23 = vector.shape_cast %21 : vector<32x1xi1> to vector<32x1xi1>
    %24 = vector.broadcast %23 : vector<32x1xi1> to vector<32x64xi1>
    %25 = vector.broadcast %cst_14 : f32 to vector<32x64xf32>
    %26 = arith.select %24, %11, %25 : vector<32x64xi1>, vector<32x64xf32>
    %27 = arith.truncf %26 : vector<32x64xf32> to vector<32x64xbf16>
    %c16 = arith.constant 16 : index
    %c0_15 = arith.constant 0 : index
    %28 = vector.load %arg6[%c16, %c0_15] : memref<64x64xbf16, #tpu.memory_space<vmem>>, vector<32x64xbf16>
    tpu.vector_store %arg6[%c16, %c0_15], %27 {strides = array<i32>} : memref<64x64xbf16, #tpu.memory_space<vmem>>, vector<32x64xbf16>,
    %c15 = arith.constant 15 : index
    %c0_16 = arith.constant 0 : index
    %29 = vector.load %arg6[%c15, %c0_16] : memref<64x64xbf16, #tpu.memory_space<vmem>>, vector<32x64xbf16>
    %c16_17 = arith.constant 16 : index
    %c0_18 = arith.constant 0 : index
    %30 = vector.load %arg6[%c16_17, %c0_18] : memref<64x64xbf16, #tpu.memory_space<vmem>>, vector<32x64xbf16>
    %c17 = arith.constant 17 : index
    %c0_19 = arith.constant 0 : index
    %31 = vector.load %arg6[%c17, %c0_19] : memref<64x64xbf16, #tpu.memory_space<vmem>>, vector<32x64xbf16>
    %32 = tpu.concatenate %29, %30, %31 in 1 : vector<32x64xbf16>, vector<32x64xbf16>, vector<32x64xbf16> -> vector<32x192xbf16>
    %c32 = arith.constant 32 : index
    %c0_20 = arith.constant 0 : index
    %33 = vector.load %arg3[%c32, %c0_20] : memref<608x384xbf16, #tpu.memory_space<vmem>>, vector<192x128xbf16>
    %cst_21 = arith.constant dense<0.000000e+00> : vector<32x128xf32>
    %34 = tpu.matmul %32, %33, %cst_21 {dimension_numbers = #tpu.dot_dimension_numbers<[1], [0], [0], [1], [0, 0, 1, 1], [], []>} : vector<32x192xbf16>, vector<192x128xbf16>, vector<32x128xf32> -> vector<32x128xf32>
    %c0_22 = arith.constant 0 : index
    %c384 = arith.constant 384 : index
    %35 = vector.load %arg4[%c0_22, %c384] : memref<1x1024xf32, #tpu.memory_space<vmem>>, vector<1x128xf32>
    %36 = vector.broadcast %35 : vector<1x128xf32> to vector<32x128xf32>
    %37 = arith.addf %34, %36 : vector<32x128xf32>
    %38 = vector.extract_strided_slice %10 {offsets = [0, 128], sizes = [32, 128], strides = [1, 1]} : vector<32x384xf32> to vector<32x128xf32>
    %39 = arith.addf %37, %38 : vector<32x128xf32>
    %40 = vector.extract_strided_slice %39 {offsets = [0, 0], sizes = [32, 64], strides = [1, 1]} : vector<32x128xf32> to vector<32x64xf32>
    %41 = math.tanh %40 : vector<32x64xf32>
    %42 = vector.extract_strided_slice %39 {offsets = [0, 64], sizes = [32, 64], strides = [1, 1]} : vector<32x128xf32> to vector<32x64xf32>
    %43 = arith.negf %42 : vector<32x64xf32>
    %44 = math.exp %43 : vector<32x64xf32>
    %cst_23 = arith.constant 1.000000e+00 : f32
    %45 = vector.broadcast %cst_23 : f32 to vector<32x64xf32>
    %46 = arith.addf %45, %44 : vector<32x64xf32>
    %47 = arith.divf %45, %46 : vector<32x64xf32>
    %48 = arith.mulf %41, %47 : vector<32x64xf32>
    %49 = arith.truncf %48 : vector<32x64xf32> to vector<32x64xbf16>
    %c416 = arith.constant 416 : index
    %c0_24 = arith.constant 0 : index
    %50 = vector.load %arg3[%c416, %c0_24] : memref<608x384xbf16, #tpu.memory_space<vmem>>, vector<64x128xbf16>
    %cst_25 = arith.constant dense<0.000000e+00> : vector<32x128xf32>
    %51 = tpu.matmul %49, %50, %cst_25 {dimension_numbers = #tpu.dot_dimension_numbers<[1], [0], [0], [1], [0, 0, 1, 1], [], []>} : vector<32x64xbf16>, vector<64x128xbf16>, vector<32x128xf32> -> vector<32x128xf32>
    %c0_26 = arith.constant 0 : index
    %c640 = arith.constant 640 : index
    %52 = vector.load %arg4[%c0_26, %c640] : memref<1x1024xf32, #tpu.memory_space<vmem>>, vector<1x128xf32>
    %53 = vector.broadcast %52 : vector<1x128xf32> to vector<32x128xf32>
    %54 = arith.addf %51, %53 : vector<32x128xf32>
    %55 = vector.extract_strided_slice %54 {offsets = [0, 0], sizes = [32, 64], strides = [1, 1]} : vector<32x128xf32> to vector<32x64xf32>
    %56 = arith.addf %11, %55 : vector<32x64xf32>
    %57 = vector.extract_strided_slice %54 {offsets = [0, 64], sizes = [32, 64], strides = [1, 1]} : vector<32x128xf32> to vector<32x64xf32>
    %58 = arith.addf %22, %57 : vector<32x64xf32>
    %cst_27 = arith.constant 0.000000e+00 : f32
    %59 = vector.shape_cast %21 : vector<32x1xi1> to vector<32x1xi1>
    %60 = vector.broadcast %59 : vector<32x1xi1> to vector<32x64xi1>
    %61 = vector.broadcast %cst_27 : f32 to vector<32x64xf32>
    %62 = arith.select %60, %56, %61 : vector<32x64xi1>, vector<32x64xf32>
    %63 = arith.truncf %62 : vector<32x64xf32> to vector<32x64xbf16>
    %c16_28 = arith.constant 16 : index
    %c0_29 = arith.constant 0 : index
    %64 = vector.load %arg6[%c16_28, %c0_29] : memref<64x64xbf16, #tpu.memory_space<vmem>>, vector<32x64xbf16>
    tpu.vector_store %arg6[%c16_28, %c0_29], %63 {strides = array<i32>} : memref<64x64xbf16, #tpu.memory_space<vmem>>, vector<32x64xbf16>,
    %c14 = arith.constant 14 : index
    %c0_30 = arith.constant 0 : index
    %65 = vector.load %arg6[%c14, %c0_30] : memref<64x64xbf16, #tpu.memory_space<vmem>>, vector<32x64xbf16>
    %c16_31 = arith.constant 16 : index
    %c0_32 = arith.constant 0 : index
    %66 = vector.load %arg6[%c16_31, %c0_32] : memref<64x64xbf16, #tpu.memory_space<vmem>>, vector<32x64xbf16>
    %c18 = arith.constant 18 : index
    %c0_33 = arith.constant 0 : index
    %67 = vector.load %arg6[%c18, %c0_33] : memref<64x64xbf16, #tpu.memory_space<vmem>>, vector<32x64xbf16>
    %68 = tpu.concatenate %65, %66, %67 in 1 : vector<32x64xbf16>, vector<32x64xbf16>, vector<32x64xbf16> -> vector<32x192xbf16>
    %c224 = arith.constant 224 : index
    %c0_34 = arith.constant 0 : index
    %69 = vector.load %arg3[%c224, %c0_34] : memref<608x384xbf16, #tpu.memory_space<vmem>>, vector<192x128xbf16>
    %cst_35 = arith.constant dense<0.000000e+00> : vector<32x128xf32>
    %70 = tpu.matmul %68, %69, %cst_35 {dimension_numbers = #tpu.dot_dimension_numbers<[1], [0], [0], [1], [0, 0, 1, 1], [], []>} : vector<32x192xbf16>, vector<192x128xbf16>, vector<32x128xf32> -> vector<32x128xf32>
    %c0_36 = arith.constant 0 : index
    %c512 = arith.constant 512 : index
    %71 = vector.load %arg4[%c0_36, %c512] : memref<1x1024xf32, #tpu.memory_space<vmem>>, vector<1x128xf32>
    %72 = vector.broadcast %71 : vector<1x128xf32> to vector<32x128xf32>
    %73 = arith.addf %70, %72 : vector<32x128xf32>
    %74 = vector.extract_strided_slice %10 {offsets = [0, 256], sizes = [32, 128], strides = [1, 1]} : vector<32x384xf32> to vector<32x128xf32>
    %75 = arith.addf %73, %74 : vector<32x128xf32>
    %76 = vector.extract_strided_slice %75 {offsets = [0, 0], sizes = [32, 64], strides = [1, 1]} : vector<32x128xf32> to vector<32x64xf32>
    %77 = math.tanh %76 : vector<32x64xf32>
    %78 = vector.extract_strided_slice %75 {offsets = [0, 64], sizes = [32, 64], strides = [1, 1]} : vector<32x128xf32> to vector<32x64xf32>
    %79 = arith.negf %78 : vector<32x64xf32>
    %80 = math.exp %79 : vector<32x64xf32>
    %cst_37 = arith.constant 1.000000e+00 : f32
    %81 = vector.broadcast %cst_37 : f32 to vector<32x64xf32>
    %82 = arith.addf %81, %80 : vector<32x64xf32>
    %83 = arith.divf %81, %82 : vector<32x64xf32>
    %84 = arith.mulf %77, %83 : vector<32x64xf32>
    %85 = arith.truncf %84 : vector<32x64xf32> to vector<32x64xbf16>
    %c480 = arith.constant 480 : index
    %c0_38 = arith.constant 0 : index
    %86 = vector.load %arg3[%c480, %c0_38] : memref<608x384xbf16, #tpu.memory_space<vmem>>, vector<64x128xbf16>
    %cst_39 = arith.constant dense<0.000000e+00> : vector<32x128xf32>
    %87 = tpu.matmul %85, %86, %cst_39 {dimension_numbers = #tpu.dot_dimension_numbers<[1], [0], [0], [1], [0, 0, 1, 1], [], []>} : vector<32x64xbf16>, vector<64x128xbf16>, vector<32x128xf32> -> vector<32x128xf32>
    %c0_40 = arith.constant 0 : index
    %c768 = arith.constant 768 : index
    %88 = vector.load %arg4[%c0_40, %c768] : memref<1x1024xf32, #tpu.memory_space<vmem>>, vector<1x128xf32>
    %89 = vector.broadcast %88 : vector<1x128xf32> to vector<32x128xf32>
    %90 = arith.addf %87, %89 : vector<32x128xf32>
    %91 = vector.extract_strided_slice %90 {offsets = [0, 0], sizes = [32, 64], strides = [1, 1]} : vector<32x128xf32> to vector<32x64xf32>
    %92 = arith.addf %58, %91 : vector<32x64xf32>
    %93 = arith.truncf %92 : vector<32x64xf32> to vector<32x64xbf16>
    %c544 = arith.constant 544 : index
    %c0_41 = arith.constant 0 : index
    %94 = vector.load %arg3[%c544, %c0_41] : memref<608x384xbf16, #tpu.memory_space<vmem>>, vector<64x128xbf16>
    %cst_42 = arith.constant dense<0.000000e+00> : vector<32x128xf32>
    %95 = tpu.matmul %93, %94, %cst_42 {dimension_numbers = #tpu.dot_dimension_numbers<[1], [0], [0], [1], [0, 0, 1, 1], [], []>} : vector<32x64xbf16>, vector<64x128xbf16>, vector<32x128xf32> -> vector<32x128xf32>
    %c0_43 = arith.constant 0 : index
    %c896 = arith.constant 896 : index
    %96 = vector.load %arg4[%c0_43, %c896] : memref<1x1024xf32, #tpu.memory_space<vmem>>, vector<1x128xf32>
    %97 = vector.broadcast %96 : vector<1x128xf32> to vector<32x128xf32>
    %98 = arith.addf %95, %97 : vector<32x128xf32>
    %99 = vector.extract_strided_slice %98 {offsets = [8, 0], sizes = [16, 128], strides = [1, 1]} : vector<32x128xf32> to vector<16x128xf32>
    %c0_44 = arith.constant 0 : index
    %c0_45 = arith.constant 0 : index
    %c0_46 = arith.constant 0 : index
    %100 = vector.load %arg5[%c0_44, %c0_45, %c0_46] : memref<1x16x128xf32, #tpu.memory_space<vmem>>, vector<1x16x128xf32>
    %101 = vector.shape_cast %100 : vector<1x16x128xf32> to vector<16x128xf32>
    %102 = vector.shape_cast %99 : vector<16x128xf32> to vector<1x16x128xf32>
    tpu.vector_store %arg5[%c0_44, %c0_45, %c0_46], %102 {strides = array<i32>} : memref<1x16x128xf32, #tpu.memory_space<vmem>>, vector<1x16x128xf32>,
    return
  }
  func.func @transform_0(%arg0: i32, %arg1: i32) -> (i32, i32, i32, i32) {
    %c0_i32 = arith.constant 0 : i32
    %c0_i32_0 = arith.constant 0 : i32
    %c0_i32_1 = arith.constant 0 : i32
    return %arg0, %arg1, %c0_i32, %c0_i32_0 : i32, i32, i32, i32
  }
  func.func @transform_1(%arg0: i32, %arg1: i32) -> (i32, i32) {
    %c0_i32 = arith.constant 0 : i32
    %c0_i32_0 = arith.constant 0 : i32
    %c0_i32_1 = arith.constant 0 : i32
    return %c0_i32, %c0_i32_0 : i32, i32
  }
  func.func @transform_2(%arg0: i32, %arg1: i32) -> (i32, i32) {
    %c0_i32 = arith.constant 0 : i32
    %c0_i32_0 = arith.constant 0 : i32
    %c0_i32_1 = arith.constant 0 : i32
    return %c0_i32, %c0_i32_0 : i32, i32
  }
  func.func @transform_3(%arg0: i32, %arg1: i32) -> (i32, i32, i32) {
    %c0_i32 = arith.constant 0 : i32
    %c0_i32_0 = arith.constant 0 : i32
    return %arg0, %arg1, %c0_i32 : i32, i32, i32
  }
}

</mosaic_0001>

<llo_original>
// kernel: wn_forward.1
$region0: #{wn_forward.1}
  #allocation0 [shape = 'u32[]', space=smem, size = 0x4, offset = 0x4, fixed_abs, tag = 'smem constant byte address 0x4 - core index']
  #allocation1 [shape = 'u32[72,128]{1,0:T(1,128)}', space=vmem, size = 0x9000, scoped, tag = 'internal scratch']
  #allocation2 [shape = 'bf16[64,64]{1,0:T(8,128)(2,1)}', space=vmem, size = 0x4000, scoped, tag = 'scratch operand']
  %s0 = inlined_call_operand.vmem [shape: bf16[2,1,32,32], index: 0, kind: input, shape index: {}]
  %s1 = inlined_call_operand.vmem [shape: bf16[608,384], index: 1, kind: input, shape index: {}]
  %s2 = inlined_call_operand.vmem [shape: f32[1,1024], index: 2, kind: input, shape index: {}]
  %s3 = inlined_call_operand.vmem [shape: f32[2,16,128], index: 3, kind: output, shape index: {}]
  %s4 = sld [smem:[#allocation0]]
  $region45: #{wn_forward.1} parent=0
    _
  %s6 = ssub.s32 1, %s4
  %s7 = scalar_select 0, %s6, %s4
  loop: start=0, step=1, limit=4
  $region2: #{wn_forward.1} parent=0 // loop_pre_header
    _
  $region3: #{wn_forward.1} parent=0 // loop_header
    %s9 = sphi 0, %s13
    %p10 = scmp.ge.s32.totalorder %s9, 4
    %s16 = sphi 0, %s28
    %s17 = sphi 0, %s24
    %s18 = sphi 0, %s16
    %s19 = sphi 0, %s17
    %s20 = sphi 0, %s18
    %s21 = sphi 0, %s19
    %s33 = sphi 0, %s35
    %s36 = sphi 0, %s33
    %s37 = sphi 0, %s36
    %s53 = sphi 0, %s37
    %s57 = sphi 0, %s57
    %s59 = sphi 0, %s57
    %s60 = sphi 0, %s59
    %s74 = sphi 0, %s60
    %s78 = sphi 0, %s78
    %s80 = sphi 0, %s78
    %s81 = sphi 0, %s80
    %s95 = sphi 0, %s81
    %s103 = sphi 0, %s105
    %s106 = sphi 0, %s103
    %s107 = sphi 0, %s106
    %s123 = sphi 0, %s107
  $region4: #{wn_forward.1} parent=0 // loop_header_branch
    %12 = sbr.rel (%p10) target = $region8
  $region5: #{wn_forward.1} parent=0 // loop_body
    %s14 = ssub.s32 %s9, 1
    %s15 = ssub.s32 %s9, 2
    %s22 = sadd.s32 1, %s17
    %p23 = scmp.ge.s32.totalorder %s22, 1
    %s24 = scalar_select %p23, 0, %s22
    %s25 = sadd.s32 1, %s16
    %s26 = scalar_select %p23, %s25, %s16
    %p27 = scmp.ge.s32.totalorder %s26, 2
    %s28 = scalar_select %p27, 0, %s26
    %s29 = ssub.s32 %s16, %s28
    %s30 = ssub.s32 %s17, %s24
    %s31 = sor.u32 %s29, %s30
    %p32 = scmp.eq.s32.totalorder %s31, 0
    %s34 = sadd.s32 %s33, 1
    %s35 = scalar_select %p32, %s33, %s34
    %p38 = pneg %p32
    %p39 = scmp.eq.s32.totalorder %s9, 1
    %p40 = por %p38, %p39
    %p41 = scmp.ne.s32.totalorder %s33, %s36
    %p42 = scmp.eq.s32.totalorder %s9, 0
    %p43 = por %p41, %p42
    %p44 = scmp.ne.s32.totalorder %s33, %s36
    %p45 = scmp.eq.s32.totalorder %s14, 1
    %p46 = por %p44, %p45
    %p47 = scmp.ne.s32.totalorder %s36, %s37
    %p48 = scmp.eq.s32.totalorder %s14, 0
    %p49 = por %p47, %p48
    %p50 = scmp.ne.s32.totalorder %s36, %s37
    %p51 = scmp.eq.s32.totalorder %s15, 1
    %p52 = por %p50, %p51
    %p54 = scmp.ne.s32.totalorder %s37, %s53
    %p55 = scmp.eq.s32.totalorder %s15, 0
    %p56 = por %p54, %p55
    %s58 = sadd.s32 %s57, 1
    %p61 = scmp.eq.s32.totalorder %s9, 1
    %p62 = scmp.ne.s32.totalorder %s57, %s59
    %p63 = scmp.eq.s32.totalorder %s9, 0
    %p64 = por %p62, %p63
    %p65 = scmp.ne.s32.totalorder %s57, %s59
    %p66 = scmp.eq.s32.totalorder %s14, 1
    %p67 = por %p65, %p66
    %p68 = scmp.ne.s32.totalorder %s59, %s60
    %p69 = scmp.eq.s32.totalorder %s14, 0
    %p70 = por %p68, %p69
    %p71 = scmp.ne.s32.totalorder %s59, %s60
    %p72 = scmp.eq.s32.totalorder %s15, 1
    %p73 = por %p71, %p72
    %p75 = scmp.ne.s32.totalorder %s60, %s74
    %p76 = scmp.eq.s32.totalorder %s15, 0
    %p77 = por %p75, %p76
    %s79 = sadd.s32 %s78, 1
    %p82 = scmp.eq.s32.totalorder %s9, 1
    %p83 = scmp.ne.s32.totalorder %s78, %s80
    %p84 = scmp.eq.s32.totalorder %s9, 0
    %p85 = por %p83, %p84
    %p86 = scmp.ne.s32.totalorder %s78, %s80
    %p87 = scmp.eq.s32.totalorder %s14, 1
    %p88 = por %p86, %p87
    %p89 = scmp.ne.s32.totalorder %s80, %s81
    %p90 = scmp.eq.s32.totalorder %s14, 0
    %p91 = por %p89, %p90
    %p92 = scmp.ne.s32.totalorder %s80, %s81
    %p93 = scmp.eq.s32.totalorder %s15, 1
    %p94 = por %p92, %p93
    %p96 = scmp.ne.s32.totalorder %s81, %s95
    %p97 = scmp.eq.s32.totalorder %s15, 0
    %p98 = por %p96, %p97
    %s99 = ssub.s32 %s16, %s28
    %s100 = ssub.s32 %s17, %s24
    %s101 = sor.u32 %s99, %s100
    %p102 = scmp.eq.s32.totalorder %s101, 0
    %s104 = sadd.s32 %s103, 1
    %s105 = scalar_select %p102, %s103, %s104
    %p108 = pneg %p102
    %p109 = scmp.eq.s32.totalorder %s9, 1
    %p110 = por %p108, %p109
    %p111 = scmp.ne.s32.totalorder %s103, %s106
    %p112 = scmp.eq.s32.totalorder %s9, 0
    %p113 = por %p111, %p112
    %p114 = scmp.ne.s32.totalorder %s103, %s106
    %p115 = scmp.eq.s32.totalorder %s14, 1
    %p116 = por %p114, %p115
    %p117 = scmp.ne.s32.totalorder %s106, %s107
    %p118 = scmp.eq.s32.totalorder %s14, 0
    %p119 = por %p117, %p118
    %p120 = scmp.ne.s32.totalorder %s106, %s107
    %p121 = scmp.eq.s32.totalorder %s15, 1
    %p122 = por %p120, %p121
    %p124 = scmp.ne.s32.totalorder %s107, %s123
    %p125 = scmp.eq.s32.totalorder %s15, 0
    %p126 = por %p124, %p125
    %p127 = scmp.le.s32.totalorder 1, %s9
    %p128 = scmp.lt.s32.totalorder %s9, 3
    %p129 = pnand %p127, %p128
    %p130 = pneg %p129
    // Predicated region
    $region9: #{wn_forward.1} parent=5 // pred_check
      _
    $region10: #{wn_forward.1} parent=5 // pred_check_branch
      %132 = sbr.rel (%p129) target = $region12
    $region11: #{wn_forward.1} parent=5 // pred_region
      %s133 = ssub.s32 %s9, 1
      // Predicated region
      $region13: #{wn_forward.1} parent=11 // pred_check
        %p134 = pneg %p70
      $region14: #{wn_forward.1} parent=11 // pred_check_branch
        %136 = sbr.rel (%p134) target = $region16
      $region15: #{wn_forward.1} parent=11 // pred_region
        _
      $region16: #{wn_forward.1} parent=11 // pred_fallthru
        _
      // Predicated region
      $region17: #{wn_forward.1} parent=11 // pred_check
        %p137 = pneg %p91
      $region18: #{wn_forward.1} parent=11 // pred_check_branch
        %139 = sbr.rel (%p137) target = $region20
      $region19: #{wn_forward.1} parent=11 // pred_region
        _
      $region20: #{wn_forward.1} parent=11 // pred_fallthru
        _
    $region12: #{wn_forward.1} parent=5 // pred_fallthru
      _
    %p140 = scmp.lt.s32.totalorder %s9, 2
    // Predicated region
    $region21: #{wn_forward.1} parent=5 // pred_check
      %p141 = pneg %p140
    $region22: #{wn_forward.1} parent=5 // pred_check_branch
      %143 = sbr.rel (%p141) target = $region24
    $region23: #{wn_forward.1} parent=5 // pred_region
      // Predicated region
      $region25: #{wn_forward.1} parent=23 // pred_check
        %p144 = pneg %p43
      $region26: #{wn_forward.1} parent=23 // pred_check_branch
        %146 = sbr.rel (%p144) target = $region28
      $region27: #{wn_forward.1} parent=23 // pred_region
        %p147 = scmp.lt.s32.totalorder %s16, 1
        %s148 = scalar_select %p147, %s16, 1
        %p149 = scmp.lt.s32.totalorder %s17, 0
        %s150 = scalar_select %p149, %s17, 0
        %s151 = smul.addr %s150, 4
        %s152 = smul.addr %s148, 4
        %s153 = sadd.s32 %s151, %s152
        %s154 = smul.addr %s153, 4
        %s155 = scalar_lea.vmem %s0, %s154
      $region28: #{wn_forward.1} parent=23 // pred_fallthru
        _
    $region24: #{wn_forward.1} parent=5 // pred_fallthru
      _
    %p156 = scmp.le.s32.totalorder 1, %s9
    %p157 = scmp.lt.s32.totalorder %s9, 3
    %p158 = pnand %p156, %p157
    %p159 = pneg %p158
    // Predicated region
    $region29: #{wn_forward.1} parent=5 // pred_check
      _
    $region30: #{wn_forward.1} parent=5 // pred_check_branch
      %161 = sbr.rel (%p158) target = $region32
    $region31: #{wn_forward.1} parent=5 // pred_region
      %s162 = ssub.s32 %s9, 1
      %p163 = scmp.lt.s32.totalorder %s18, 1
      %s164 = scalar_select %p163, %s18, 1
      %p165 = scmp.lt.s32.totalorder %s19, 0
      %s166 = scalar_select %p165, %s19, 0
      %s167 = smul.addr %s166, 4
      %s168 = smul.addr %s164, 4
      %s169 = sadd.s32 %s167, %s168
      %s170 = smul.addr %s169, 4
      %s171 = scalar_lea.vmem %s0, %s170
      %p172 = pneg %p49
      %p173 = pneg %p46
      %p174 = pneg %p70
      %p175 = pneg %p67
      %p176 = pneg %p91
      %p177 = pneg %p88
      %p178 = pneg %p119
      %p179 = pneg %p116
      %s180 = smul.u32 2, %s19
      %p181 = scmp.lt.s32.totalorder %s18, 1
      %s182 = scalar_select %p181, %s18, 1
      %p183 = scmp.lt.s32.totalorder %s180, 1
      %s184 = scalar_select %p183, %s180, 1
      %s185 = smul.addr %s182, 2
      %s186 = sadd.s32 %s184, %s185
      %s187 = smul.addr %s186, 8
      %s188 = scalar_lea.vmem %s3, %s187
      %p189 = scmp.lt.s32.totalorder %s18, 1
      %s190 = scalar_select %p189, %s18, 1
      %p191 = scmp.lt.s32.totalorder %s19, 0
      %s192 = scalar_select %p191, %s19, 0
      %s193 = smul.addr %s192, 4
      %s194 = smul.addr %s190, 4
      %s195 = sadd.s32 %s193, %s194
      %s196 = smul.addr %s195, 4
      %s197 = scalar_lea.vmem %s0, %s196
      %s198 = smul.u32 2, %s19
      %p199 = scmp.lt.s32.totalorder %s18, 1
      %s200 = scalar_select %p199, %s18, 1
      %p201 = scmp.lt.s32.totalorder %s198, 1
      %s202 = scalar_select %p201, %s198, 1
      %s203 = smul.addr %s200, 2
      %s204 = sadd.s32 %s202, %s203
      %s205 = smul.addr %s204, 8
      %s206 = scalar_lea.vmem %s3, %s205
      %s207 = smul.u32 2, %s19
      %vm209 = vcmask 519168
      %210 = vst.msk [vmem:[#allocation2] sm:$0xf] %vm209, 0
      %211 = vst.msk [vmem:[#allocation2 + $0x4] sm:$0xf] %vm209, 0
      %212 = vst.msk [vmem:[#allocation2 + $0x18] sm:$0xf] %vm209, 0
      %213 = vst.msk [vmem:[#allocation2 + $0x1c] sm:$0xf] %vm209, 0
      %v214 = vld [vmem:[%s197] sm:$0xf]
      %v215 = vld [vmem:[%s197 + $0x4] sm:$0xf]
      %v216 = vld [vmem:[%s197 + $0x8] sm:$0xf]
      %v217 = vld [vmem:[%s197 + $0xc] sm:$0xf]
      %v218 = vld [vmem:[%s1] sm:$0xff]
      %v219 = vld [vmem:[%s1 + $0x8] sm:$0xf]
      %v220 = vld [vmem:[%s1 + $0xc] sm:$0xff]
      %v221 = vld [vmem:[%s1 + $0x14] sm:$0xf]
      %v222 = vld [vmem:[%s1 + $0x18] sm:$0xff]
      %v223 = vld [vmem:[%s1 + $0x20] sm:$0xf]
      %v224 = vld [vmem:[%s1 + $0x24] sm:$0xff]
      %v225 = vld [vmem:[%s1 + $0x2c] sm:$0xf]
      %v226 = vld [vmem:[%s2] sm:$0x7]
      %v228 = vperm.slane %v226, 0
      %v229 = vperm.slane %v226, 1
      %v230 = vperm.slane %v226, 2
      %v238 = vunpack.c.l.b16 %v214
      %v239 = vunpack.c.l.b16 %v215
      %v240 = vunpack.c.l.b16 %v216
      %v241 = vunpack.c.l.b16 %v217
      %v242 = vpack.c.b16 %v239, %v238
      %v243 = vpack.c.b16 %v241, %v240
      %v252 = vunpack.c.l.b16 %v218
      %v253 = vunpack.c.h.b16 %v218
      %v254 = vunpack.c.l.b16 %v219
      %v255 = vunpack.c.l.b16 %v220
      %v256 = vunpack.c.h.b16 %v220
      %v257 = vunpack.c.l.b16 %v221
      %v258 = vunpack.c.l.b16 %v222
      %v259 = vunpack.c.h.b16 %v222
      %v260 = vunpack.c.l.b16 %v223
      %v261 = vunpack.c.l.b16 %v224
      %v262 = vunpack.c.h.b16 %v224
      %v263 = vunpack.c.l.b16 %v225
      %v264 = vpack.c.b16 %v255, %v252
      %v265 = vpack.c.b16 %v256, %v253
      %v266 = vpack.c.b16 %v257, %v254
      %v267 = vpack.c.b16 %v261, %v258
      %v268 = vpack.c.b16 %v262, %v259
      %v269 = vpack.c.b16 %v263, %v260
      %vm276 = vcmask 261120
      %v278 = vsel %vm276, %v242, 0
      %v281 = vsel %vm276, %v243, 0
      %283 = vmatpush.bf16.msra.mxu0 0
      %284 = vmatpush.bf16.msra.mxu0 0
      %285 = vmatpush.bf16.msra.mxu0 0
      %286 = vmatpush.bf16.msra.mxu0 0
      %287 = vmatpush.bf16.msra.mxu0 0
      %288 = vmatpush.bf16.msra.mxu0 0
      %289 = vmatpush.bf16.msra.mxu0 %v267
      %290 = vmatpush.bf16.msra.mxu0 %v264
      %291 = vmatmul.bf16.gmra.mxu0 %v278
      %v292 = vpop.f32.mrf.mxu0
      %v293 = vadd.f32 %v228, %v292
      %v294 = vpop.f32.mrf.mxu0
      %v295 = vadd.f32 %v228, %v294
      %296 = vmatmul.bf16.gmra.mxu0 %v281
      %v297 = vpop.f32.mrf.mxu0
      %v298 = vadd.f32 %v228, %v297
      %v299 = vpop.f32.mrf.mxu0
      %v300 = vadd.f32 %v228, %v299
      %301 = vdwg.mxu0
      %302 = vmatpush.bf16.msra.mxu0 0
      %303 = vmatpush.bf16.msra.mxu0 0
      %304 = vmatpush.bf16.msra.mxu0 0
      %305 = vmatpush.bf16.msra.mxu0 0
      %306 = vmatpush.bf16.msra.mxu0 0
      %307 = vmatpush.bf16.msra.mxu0 0
      %308 = vmatpush.bf16.msra.mxu0 %v268
      %309 = vmatpush.bf16.msra.mxu0 %v265
      %310 = vmatmul.bf16.gmra.mxu0 %v278
      %v311 = vpop.f32.mrf.mxu0
      %v312 = vadd.f32 %v229, %v311
      %v313 = vpop.f32.mrf.mxu0
      %v314 = vadd.f32 %v229, %v313
      %315 = vmatmul.bf16.gmra.mxu0 %v281
      %v316 = vpop.f32.mrf.mxu0
      %v317 = vadd.f32 %v229, %v316
      %v318 = vpop.f32.mrf.mxu0
      %v319 = vadd.f32 %v229, %v318
      %320 = vdwg.mxu0
      %321 = vmatpush.bf16.msra.mxu0 0
      %322 = vmatpush.bf16.msra.mxu0 0
      %323 = vmatpush.bf16.msra.mxu0 0
      %324 = vmatpush.bf16.msra.mxu0 0
      %325 = vmatpush.bf16.msra.mxu0 0
      %326 = vmatpush.bf16.msra.mxu0 0
      %327 = vmatpush.bf16.msra.mxu0 %v269
      %328 = vmatpush.bf16.msra.mxu0 %v266
      %329 = vmatmul.bf16.gmra.mxu0 %v278
      %v330 = vpop.f32.mrf.mxu0
      %v331 = vadd.f32 %v230, %v330
      %v332 = vpop.f32.mrf.mxu0
      %v333 = vadd.f32 %v230, %v332
      %334 = vmatmul.bf16.gmra.mxu0 %v281
      %v335 = vpop.f32.mrf.mxu0
      %v336 = vadd.f32 %v230, %v335
      %v337 = vpop.f32.mrf.mxu0
      %v338 = vadd.f32 %v230, %v337
      %339 = vdwg.mxu0
      %v340 = vlaneseq
      %v341 = vshrl.u32 %v340, 7
      %v342 = vadd.s32 %v341, 8
      %v343 = vadd.s32 %v341, 16
      %v344 = vadd.s32 %v341, 24
      %s345 = smul.u32 %s19, 16
      %s346 = ssub.s32 %s345, 8
      %v347 = vstv %s346
      %v348 = vadd.s32 %v347, %v341
      %v349 = vadd.s32 %v347, %v342
      %v350 = vadd.s32 %v347, %v343
      %v351 = vadd.s32 %v347, %v344
      %vm352 = vcmp.ge.s32.totalorder %v348, 0
      %vm353 = vcmp.ge.s32.totalorder %v349, 0
      %vm354 = vcmp.ge.s32.totalorder %v350, 0
      %vm355 = vcmp.ge.s32.totalorder %v351, 0
      %vm356 = vcmp.lt.s32.totalorder %v348, 16
      %vm357 = vcmp.lt.s32.totalorder %v349, 16
      %vm358 = vcmp.lt.s32.totalorder %v350, 16
      %vm359 = vcmp.lt.s32.totalorder %v351, 16
      %vm360 = vmand %vm352, %vm356
      %vm361 = vmand %vm353, %vm357
      %vm362 = vmand %vm354, %vm358
      %vm363 = vmand %vm355, %vm359
      %v364 = vsel %vm360, 1, 0
      %v365 = vsel %vm361, 1, 0
      %v366 = vsel %vm362, 1, 0
      %v367 = vsel %vm363, 1, 0
      %vm368 = vcmp.eq.s32.totalorder %v364, 1
      %vm369 = vcmp.eq.s32.totalorder %v365, 1
      %vm370 = vcmp.eq.s32.totalorder %v366, 1
      %vm371 = vcmp.eq.s32.totalorder %v367, 1
      %v372 = vsel %vm368, %v293, 0.0
      %v373 = vsel %vm369, %v295, 0.0
      %v374 = vsel %vm370, %v298, 0.0
      %v375 = vsel %vm371, %v300, 0.0
      %v376 = vpack.c.bf16 %v372, %v372
      %v377 = vpack.c.bf16 %v373, %v373
      %v378 = vpack.c.bf16 %v374, %v374
      %v379 = vpack.c.bf16 %v375, %v375
      %380 = vst.msk [vmem:[#allocation2 + $0x8] sm:$0xf] %vm209, %v376
      %381 = vst.msk [vmem:[#allocation2 + $0xc] sm:$0xf] %vm209, %v377
      %382 = vst.msk [vmem:[#allocation2 + $0x10] sm:$0xf] %vm209, %v378
      %383 = vst.msk [vmem:[#allocation2 + $0x14] sm:$0xf] %vm209, %v379
      %v384 = vld [vmem:[#allocation2 + $0x4] sm:$0x8]
      %v385 = vld [vmem:[#allocation2 + $0x8] sm:$0xf]
      %v386 = vld [vmem:[#allocation2 + $0xc] sm:$0xf]
      %v387 = vld [vmem:[#allocation2 + $0x10] sm:$0xf]
      %v388 = vld [vmem:[#allocation2 + $0x14] sm:$0xf]
      %v389 = vld [vmem:[#allocation2 + $0x18] sm:$0x1]
      %v395 = vunpack.c.l.b16 %v384
      %v396 = vunpack.c.l.b16 %v385
      %v397 = vunpack.c.l.b16 %v386
      %v398 = vunpack.c.l.b16 %v387
      %v399 = vunpack.c.l.b16 %v388
      %v400 = vpack.c.b16 %v396, %v395
      %v401 = vpack.c.b16 %v398, %v397
      %v402 = vpack.c.b16 %v399, %v399
      %v403 = vpack.c.b16 %v397, %v396
      %v404 = vpack.c.b16 %v399, %v398
      %vm405 = vsmask.f32 3328
      %v407 = vshrl.u32 %v403, 16
      %v409 = vrot.slane %v407, 4
      %v410 = vshll.u32 %v403, 16
      %v412 = vrot.slane %v410, 5
      %v413 = vor.u32 %v409, %v412
      %v415 = vshrl.u32 %v404, 16
      %v417 = vrot.slane %v415, 4
      %v418 = vshll.u32 %v404, 16
      %v420 = vrot.slane %v418, 5
      %v421 = vor.u32 %v417, %v420
      %v422 = vsel %vm405, %v413, %v421
      %423 = vrot.lane.b32.xlu0 %v413, 64
      %v424 = vpop.permute.xlu0 %423
      %425 = vrot.lane.b32.xlu0 %v422, 64
      %v426 = vpop.permute.xlu0 %425
      %427 = vrot.lane.b32.xlu0 %v421, 64
      %v428 = vpop.permute.xlu0 %427
      %v430 = vunpack.c.l.b16 %v389
      %v431 = vpack.c.b16 %v430, %v430
      %vm432 = vcmask 1042432
      %v433 = vrot.slane %v403, 5
      %v434 = vrot.slane %v404, 5
      %v435 = vsel %vm432, %v433, %v434
      %v436 = vrot.slane %v431, 5
      %v437 = vsel %vm432, %v434, %v436
      %vm438 = vcmask 523264
      %v441 = vsel %vm438, %v400, %v424
      %v444 = vsel %vm438, %v401, %v426
      %v447 = vsel %vm438, %v402, %v428
      %v448 = vld [vmem:[%s1 + $0x30] sm:$0xf]
      %v449 = vld [vmem:[%s1 + $0x3c] sm:$0xf]
      %v450 = vld [vmem:[%s1 + $0x48] sm:$0xf]
      %v451 = vld [vmem:[%s1 + $0x54] sm:$0xf]
      %v452 = vld [vmem:[%s1 + $0x60] sm:$0xf]
      %v453 = vld [vmem:[%s1 + $0x6c] sm:$0xf]
      %v454 = vld [vmem:[%s1 + $0x78] sm:$0xf]
      %v455 = vld [vmem:[%s1 + $0x84] sm:$0xf]
      %v456 = vld [vmem:[%s1 + $0x90] sm:$0xf]
      %v457 = vld [vmem:[%s1 + $0x9c] sm:$0xf]
      %v458 = vld [vmem:[%s1 + $0xa8] sm:$0xf]
      %v459 = vld [vmem:[%s1 + $0xb4] sm:$0xf]
      %v460 = vld [vmem:[%s1 + $0xc0] sm:$0xf]
      %v461 = vld [vmem:[%s1 + $0xcc] sm:$0xf]
      %v462 = vld [vmem:[%s1 + $0xd8] sm:$0xf]
      %v463 = vld [vmem:[%s1 + $0xe4] sm:$0xf]
      %v464 = vld [vmem:[%s1 + $0xf0] sm:$0xf]
      %v465 = vld [vmem:[%s1 + $0xfc] sm:$0xf]
      %v466 = vld [vmem:[%s1 + $0x108] sm:$0xf]
      %v467 = vld [vmem:[%s1 + $0x114] sm:$0xf]
      %v468 = vld [vmem:[%s1 + $0x120] sm:$0xf]
      %v469 = vld [vmem:[%s1 + $0x12c] sm:$0xf]
      %v470 = vld [vmem:[%s1 + $0x138] sm:$0xf]
      %v471 = vld [vmem:[%s1 + $0x144] sm:$0xf]
      %v472 = vld [vmem:[%s2 + $0x3] sm:$0x1]
      %v474 = vperm.slane %v472, 0
      %vm476 = vsmask.f32 4352
      %v477 = vshrl.u32 %v441, 16
      %v479 = vrot.slane %v477, 3
      %v480 = vshll.u32 %v441, 16
      %v482 = vrot.slane %v480, 4
      %v483 = vor.u32 %v479, %v482
      %v484 = vshrl.u32 %v444, 16
      %v486 = vrot.slane %v484, 3
      %v487 = vshll.u32 %v444, 16
      %v489 = vrot.slane %v487, 4
      %v490 = vor.u32 %v486, %v489
      %v491 = vsel %vm476, %v483, %v490
      %v493 = vshrl.u32 %v433, 16
      %v495 = vrot.slane %v493, 3
      %v496 = vshll.u32 %v433, 16
      %v498 = vrot.slane %v496, 4
      %v499 = vor.u32 %v495, %v498
      %v501 = vshrl.u32 %v435, 16
      %v503 = vrot.slane %v501, 3
      %v504 = vshll.u32 %v435, 16
      %v506 = vrot.slane %v504, 4
      %v507 = vor.u32 %v503, %v506
      %v508 = vsel %vm476, %v499, %v507
      %v509 = vshrl.u32 %v447, 16
      %v511 = vrot.slane %v509, 3
      %v512 = vshll.u32 %v447, 16
      %v514 = vrot.slane %v512, 4
      %v515 = vor.u32 %v511, %v514
      %v516 = vsel %vm476, %v490, %v515
      %v518 = vshrl.u32 %v437, 16
      %v520 = vrot.slane %v518, 3
      %v521 = vshll.u32 %v437, 16
      %v523 = vrot.slane %v521, 4
      %v524 = vor.u32 %v520, %v523
      %v525 = vsel %vm476, %v507, %v524
      %v552 = vunpack.c.l.b16 %v448
      %v553 = vunpack.c.l.b16 %v449
      %v554 = vunpack.c.l.b16 %v450
      %v555 = vunpack.c.l.b16 %v451
      %v556 = vunpack.c.l.b16 %v452
      %v557 = vunpack.c.l.b16 %v453
      %v558 = vunpack.c.l.b16 %v454
      %v559 = vunpack.c.l.b16 %v455
      %v560 = vunpack.c.l.b16 %v456
      %v561 = vunpack.c.l.b16 %v457
      %v562 = vunpack.c.l.b16 %v458
      %v563 = vunpack.c.l.b16 %v459
      %v564 = vunpack.c.l.b16 %v460
      %v565 = vunpack.c.l.b16 %v461
      %v566 = vunpack.c.l.b16 %v462
      %v567 = vunpack.c.l.b16 %v463
      %v568 = vunpack.c.l.b16 %v464
      %v569 = vunpack.c.l.b16 %v465
      %v570 = vunpack.c.l.b16 %v466
      %v571 = vunpack.c.l.b16 %v467
      %v572 = vunpack.c.l.b16 %v468
      %v573 = vunpack.c.l.b16 %v469
      %v574 = vunpack.c.l.b16 %v470
      %v575 = vunpack.c.l.b16 %v471
      %v576 = vpack.c.b16 %v553, %v552
      %v577 = vpack.c.b16 %v555, %v554
      %v578 = vpack.c.b16 %v557, %v556
      %v579 = vpack.c.b16 %v559, %v558
      %v580 = vpack.c.b16 %v561, %v560
      %v581 = vpack.c.b16 %v563, %v562
      %v582 = vpack.c.b16 %v565, %v564
      %v583 = vpack.c.b16 %v567, %v566
      %v584 = vpack.c.b16 %v569, %v568
      %v585 = vpack.c.b16 %v571, %v570
      %v586 = vpack.c.b16 %v573, %v572
      %v587 = vpack.c.b16 %v575, %v574
      %v601 = vsel %vm438, %v508, 0
      %v604 = vsel %vm438, %v525, 0
      %606 = vmatpush.bf16.msra.mxu0 %v583
      %607 = vmatpush.bf16.msra.mxu0 %v582
      %608 = vmatpush.bf16.msra.mxu0 %v581
      %609 = vmatpush.bf16.msra.mxu0 %v580
      %610 = vmatpush.bf16.msra.mxu0 %v579
      %611 = vmatpush.bf16.msra.mxu0 %v578
      %612 = vmatpush.bf16.msra.mxu0 %v577
      %613 = vmatpush.bf16.msra.mxu0 %v576
      %614 = vmatmul.bf16.gmra.mxu0 %v491
      %v615 = vpop.f32.mrf.mxu0
      %v616 = vadd.f32 %v474, %v615
      %v617 = vpop.f32.mrf.mxu0
      %v618 = vadd.f32 %v474, %v617
      %619 = vmatmul.bf16.gmra.mxu0 %v516
      %v620 = vpop.f32.mrf.mxu0
      %v621 = vadd.f32 %v474, %v620
      %v622 = vpop.f32.mrf.mxu0
      %v623 = vadd.f32 %v474, %v622
      %624 = vdwg.mxu0
      %625 = vmatpush.bf16.msra.mxu0 0
      %626 = vmatpush.bf16.msra.mxu0 0
      %627 = vmatpush.bf16.msra.mxu0 0
      %628 = vmatpush.bf16.msra.mxu0 0
      %629 = vmatpush.bf16.msra.mxu0 %v587
      %630 = vmatpush.bf16.msra.mxu0 %v586
      %631 = vmatpush.bf16.msra.mxu0 %v585
      %632 = vmatpush.bf16.msra.mxu0 %v584
      %633 = vmatmul.bf16.gmra.mxu0 %v601
      %v634 = vpop.f32.mrf.mxu0
      %v635 = vadd.f32 %v616, %v634
      %v636 = vpop.f32.mrf.mxu0
      %v637 = vadd.f32 %v618, %v636
      %638 = vmatmul.bf16.gmra.mxu0 %v604
      %v639 = vpop.f32.mrf.mxu0
      %v640 = vadd.f32 %v621, %v639
      %v641 = vpop.f32.mrf.mxu0
      %v642 = vadd.f32 %v623, %v641
      %643 = vdwg.mxu0
      %v644 = vadd.f32 %v635, %v312
      %v645 = vadd.f32 %v637, %v314
      %v646 = vadd.f32 %v640, %v317
      %v647 = vadd.f32 %v642, %v319
      %v648 = vtanh.pop %v644
      %v649 = vtanh.pop %v645
      %v650 = vtanh.pop %v646
      %v651 = vtanh.pop %v647
      %v652 = vxor.u32 %v644, 2147483648
      %v653 = vxor.u32 %v645, 2147483648
      %v654 = vxor.u32 %v646, 2147483648
      %v655 = vxor.u32 %v647, 2147483648
      %v656 = vmul.f32 %v652, 1.442695
      %v657 = vpow.pop %v656
      %v658 = vmul.f32 %v653, 1.442695
      %v659 = vpow.pop %v658
      %v660 = vmul.f32 %v654, 1.442695
      %v661 = vpow.pop %v660
      %v662 = vmul.f32 %v655, 1.442695
      %v663 = vpow.pop %v662
      %v664 = vadd.f32 %v657, 1.0
      %v665 = vadd.f32 %v659, 1.0
      %v666 = vadd.f32 %v661, 1.0
      %v667 = vadd.f32 %v663, 1.0
      %v668 = vrcp.pop %v664
      %v669 = vmul.f32 %v664, %v668
      %v670 = vsub.f32 1.0, %v669
      %v671 = vmul.f32 %v668, %v670
      %v672 = vadd.f32 %v668, %v671
      %vm673 = vweird.f32 %v664
      %vm674 = vweird.f32 %v668
      %vm675 = vmor %vm673, %vm674
      %v676 = vsel %vm675, %v668, %v672
      %v677 = vand.u32 2147483647, %v664
      %vm678 = vcmp.eq.f32.partialorder %v677, 8.507059e+37
      %v679 = vand.u32 %v664, 2147483648
      %v680 = vor.u32 1.1754944e-38, %v679
      %v681 = vsel %vm678, %v680, %v676
      %v682 = vmul.f32 1.0, %v681
      %v683 = vrcp.pop %v665
      %v684 = vmul.f32 %v665, %v683
      %v685 = vsub.f32 1.0, %v684
      %v686 = vmul.f32 %v683, %v685
      %v687 = vadd.f32 %v683, %v686
      %vm688 = vweird.f32 %v665
      %vm689 = vweird.f32 %v683
      %vm690 = vmor %vm688, %vm689
      %v691 = vsel %vm690, %v683, %v687
      %v692 = vand.u32 2147483647, %v665
      %vm693 = vcmp.eq.f32.partialorder %v692, 8.507059e+37
      %v694 = vand.u32 %v665, 2147483648
      %v695 = vor.u32 1.1754944e-38, %v694
      %v696 = vsel %vm693, %v695, %v691
      %v697 = vmul.f32 1.0, %v696
      %v698 = vrcp.pop %v666
      %v699 = vmul.f32 %v666, %v698
      %v700 = vsub.f32 1.0, %v699
      %v701 = vmul.f32 %v698, %v700
      %v702 = vadd.f32 %v698, %v701
      %vm703 = vweird.f32 %v666
      %vm704 = vweird.f32 %v698
      %vm705 = vmor %vm703, %vm704
      %v706 = vsel %vm705, %v698, %v702
      %v707 = vand.u32 2147483647, %v666
      %vm708 = vcmp.eq.f32.partialorder %v707, 8.507059e+37
      %v709 = vand.u32 %v666, 2147483648
      %v710 = vor.u32 1.1754944e-38, %v709
      %v711 = vsel %vm708, %v710, %v706
      %v712 = vmul.f32 1.0, %v711
      %v713 = vrcp.pop %v667
      %v714 = vmul.f32 %v667, %v713
      %v715 = vsub.f32 1.0, %v714
      %v716 = vmul.f32 %v713, %v715
      %v717 = vadd.f32 %v713, %v716
      %vm718 = vweird.f32 %v667
      %vm719 = vweird.f32 %v713
      %vm720 = vmor %vm718, %vm719
      %v721 = vsel %vm720, %v713, %v717
      %v722 = vand.u32 2147483647, %v667
      %vm723 = vcmp.eq.f32.partialorder %v722, 8.507059e+37
      %v724 = vand.u32 %v667, 2147483648
      %v725 = vor.u32 1.1754944e-38, %v724
      %v726 = vsel %vm723, %v725, %v721
      %v727 = vmul.f32 1.0, %v726
      %732 = vrot.lane.b32.xlu0 %v682, 64
      %v733 = vpop.permute.xlu0 %732
      %734 = vrot.lane.b32.xlu0 %v697, 64
      %v735 = vpop.permute.xlu0 %734
      %736 = vrot.lane.b32.xlu0 %v712, 64
      %v737 = vpop.permute.xlu0 %736
      %738 = vrot.lane.b32.xlu0 %v727, 64
      %v739 = vpop.permute.xlu0 %738
      %v744 = vmul.f32 %v648, %v733
      %v745 = vmul.f32 %v649, %v735
      %v746 = vmul.f32 %v650, %v737
      %v747 = vmul.f32 %v651, %v739
      %v748 = vpack.c.bf16 %v745, %v744
      %v749 = vpack.c.bf16 %v747, %v746
      %v750 = vld [vmem:[%s1 + $0x270] sm:$0xf]
      %v751 = vld [vmem:[%s1 + $0x27c] sm:$0xf]
      %v752 = vld [vmem:[%s1 + $0x288] sm:$0xf]
      %v753 = vld [vmem:[%s1 + $0x294] sm:$0xf]
      %v754 = vld [vmem:[%s1 + $0x2a0] sm:$0xf]
      %v755 = vld [vmem:[%s1 + $0x2ac] sm:$0xf]
      %v756 = vld [vmem:[%s1 + $0x2b8] sm:$0xf]
      %v757 = vld [vmem:[%s1 + $0x2c4] sm:$0xf]
      %v758 = vld [vmem:[%s2 + $0x5] sm:$0x1]
      %v760 = vperm.slane %v758, 0
      %v770 = vunpack.c.l.b16 %v750
      %v771 = vunpack.c.l.b16 %v751
      %v772 = vunpack.c.l.b16 %v752
      %v773 = vunpack.c.l.b16 %v753
      %v774 = vunpack.c.l.b16 %v754
      %v775 = vunpack.c.l.b16 %v755
      %v776 = vunpack.c.l.b16 %v756
      %v777 = vunpack.c.l.b16 %v757
      %v778 = vpack.c.b16 %v771, %v770
      %v779 = vpack.c.b16 %v773, %v772
      %v780 = vpack.c.b16 %v775, %v774
      %v781 = vpack.c.b16 %v777, %v776
      %v787 = vsel %vm438, %v748, 0
      %v790 = vsel %vm438, %v749, 0
      %792 = vmatpush.bf16.msra.mxu0 0
      %793 = vmatpush.bf16.msra.mxu0 0
      %794 = vmatpush.bf16.msra.mxu0 0
      %795 = vmatpush.bf16.msra.mxu0 0
      %796 = vmatpush.bf16.msra.mxu0 %v781
      %797 = vmatpush.bf16.msra.mxu0 %v780
      %798 = vmatpush.bf16.msra.mxu0 %v779
      %799 = vmatpush.bf16.msra.mxu0 %v778
      %800 = vmatmul.bf16.gmra.mxu0 %v787
      %v801 = vpop.f32.mrf.mxu0
      %v802 = vadd.f32 %v760, %v801
      %v803 = vpop.f32.mrf.mxu0
      %v804 = vadd.f32 %v760, %v803
      %805 = vmatmul.bf16.gmra.mxu0 %v790
      %v806 = vpop.f32.mrf.mxu0
      %v807 = vadd.f32 %v760, %v806
      %v808 = vpop.f32.mrf.mxu0
      %v809 = vadd.f32 %v760, %v808
      %810 = vdwg.mxu0
      %v811 = vadd.f32 %v293, %v802
      %v812 = vadd.f32 %v295, %v804
      %v813 = vadd.f32 %v298, %v807
      %v814 = vadd.f32 %v300, %v809
      %v815 = vadd.f32 %v802, 0.0
      %v816 = vadd.f32 %v804, 0.0
      %v817 = vadd.f32 %v807, 0.0
      %v818 = vadd.f32 %v809, 0.0
      %v819 = vsel %vm368, %v811, 0.0
      %v820 = vsel %vm369, %v812, 0.0
      %v821 = vsel %vm370, %v813, 0.0
      %v822 = vsel %vm371, %v814, 0.0
      %v823 = vpack.c.bf16 %v819, %v819
      %v824 = vpack.c.bf16 %v820, %v820
      %v825 = vpack.c.bf16 %v821, %v821
      %v826 = vpack.c.bf16 %v822, %v822
      %827 = vst.msk [vmem:[#allocation2 + $0x8] sm:$0xf] %vm209, %v823
      %828 = vst.msk [vmem:[#allocation2 + $0xc] sm:$0xf] %vm209, %v824
      %829 = vst.msk [vmem:[#allocation2 + $0x10] sm:$0xf] %vm209, %v825
      %830 = vst.msk [vmem:[#allocation2 + $0x14] sm:$0xf] %vm209, %v826
      %v831 = vld [vmem:[#allocation2 + $0x4] sm:$0x8]
      %v832 = vld [vmem:[#allocation2 + $0x8] sm:$0xf]
      %v833 = vld [vmem:[#allocation2 + $0xc] sm:$0xf]
      %v834 = vld [vmem:[#allocation2 + $0x10] sm:$0xf]
      %v835 = vld [vmem:[#allocation2 + $0x14] sm:$0x7]
      %v836 = vld [vmem:[#allocation2 + $0x14] sm:$0xf]
      %v837 = vld [vmem:[#allocation2 + $0x8] sm:$0xe]
      %v838 = vld [vmem:[#allocation2 + $0x18] sm:$0x1]
      %v844 = vunpack.c.l.b16 %v831
      %v845 = vunpack.c.l.b16 %v832
      %v846 = vunpack.c.l.b16 %v833
      %v847 = vunpack.c.l.b16 %v834
      %v848 = vunpack.c.l.b16 %v835
      %v849 = vpack.c.b16 %v845, %v844
      %v850 = vpack.c.b16 %v847, %v846
      %v851 = vpack.c.b16 %v848, %v848
      %v853 = vunpack.c.l.b16 %v836
      %v854 = vpack.c.b16 %v846, %v845
      %v855 = vpack.c.b16 %v853, %v847
      %v856 = vrot.slane %v854, 5
      %v857 = vrot.slane %v855, 5
      %v858 = vsel %vm432, %v856, %v857
      %859 = vrot.lane.b32.xlu0 %v856, 64
      %v860 = vpop.permute.xlu0 %859
      %861 = vrot.lane.b32.xlu0 %v858, 64
      %v862 = vpop.permute.xlu0 %861
      %863 = vrot.lane.b32.xlu0 %v857, 64
      %v864 = vpop.permute.xlu0 %863
      %v867 = vunpack.c.l.b16 %v837
      %v868 = vunpack.c.l.b16 %v838
      %v869 = vpack.c.b16 %v846, %v867
      %v870 = vpack.c.b16 %v868, %v868
      %vm871 = vcmask 1041408
      %v872 = vrot.slane %v869, 6
      %v873 = vrot.slane %v855, 6
      %v874 = vsel %vm871, %v872, %v873
      %v875 = vrot.slane %v870, 6
      %v876 = vsel %vm871, %v873, %v875
      %v879 = vsel %vm438, %v849, %v860
      %v882 = vsel %vm438, %v850, %v862
      %v885 = vsel %vm438, %v851, %v864
      %v886 = vld [vmem:[%s1 + $0x150] sm:$0xf]
      %v887 = vld [vmem:[%s1 + $0x15c] sm:$0xf]
      %v888 = vld [vmem:[%s1 + $0x168] sm:$0xf]
      %v889 = vld [vmem:[%s1 + $0x174] sm:$0xf]
      %v890 = vld [vmem:[%s1 + $0x180] sm:$0xf]
      %v891 = vld [vmem:[%s1 + $0x18c] sm:$0xf]
      %v892 = vld [vmem:[%s1 + $0x198] sm:$0xf]
      %v893 = vld [vmem:[%s1 + $0x1a4] sm:$0xf]
      %v894 = vld [vmem:[%s1 + $0x1b0] sm:$0xf]
      %v895 = vld [vmem:[%s1 + $0x1bc] sm:$0xf]
      %v896 = vld [vmem:[%s1 + $0x1c8] sm:$0xf]
      %v897 = vld [vmem:[%s1 + $0x1d4] sm:$0xf]
      %v898 = vld [vmem:[%s1 + $0x1e0] sm:$0xf]
      %v899 = vld [vmem:[%s1 + $0x1ec] sm:$0xf]
      %v900 = vld [vmem:[%s1 + $0x1f8] sm:$0xf]
      %v901 = vld [vmem:[%s1 + $0x204] sm:$0xf]
      %v902 = vld [vmem:[%s1 + $0x210] sm:$0xf]
      %v903 = vld [vmem:[%s1 + $0x21c] sm:$0xf]
      %v904 = vld [vmem:[%s1 + $0x228] sm:$0xf]
      %v905 = vld [vmem:[%s1 + $0x234] sm:$0xf]
      %v906 = vld [vmem:[%s1 + $0x240] sm:$0xf]
      %v907 = vld [vmem:[%s1 + $0x24c] sm:$0xf]
      %v908 = vld [vmem:[%s1 + $0x258] sm:$0xf]
      %v909 = vld [vmem:[%s1 + $0x264] sm:$0xf]
      %v910 = vld [vmem:[%s2 + $0x4] sm:$0x1]
      %v912 = vperm.slane %v910, 0
      %vm917 = vcmask 1044480
      %v918 = vrot.slane %v879, 3
      %v919 = vrot.slane %v882, 3
      %v920 = vsel %vm917, %v918, %v919
      %v921 = vrot.slane %v872, 3
      %v922 = vrot.slane %v874, 3
      %v923 = vsel %vm917, %v921, %v922
      %v924 = vrot.slane %v885, 3
      %v925 = vsel %vm917, %v919, %v924
      %v926 = vrot.slane %v876, 3
      %v927 = vsel %vm917, %v922, %v926
      %v954 = vunpack.c.l.b16 %v886
      %v955 = vunpack.c.l.b16 %v887
      %v956 = vunpack.c.l.b16 %v888
      %v957 = vunpack.c.l.b16 %v889
      %v958 = vunpack.c.l.b16 %v890
      %v959 = vunpack.c.l.b16 %v891
      %v960 = vunpack.c.l.b16 %v892
      %v961 = vunpack.c.l.b16 %v893
      %v962 = vunpack.c.l.b16 %v894
      %v963 = vunpack.c.l.b16 %v895
      %v964 = vunpack.c.l.b16 %v896
      %v965 = vunpack.c.l.b16 %v897
      %v966 = vunpack.c.l.b16 %v898
      %v967 = vunpack.c.l.b16 %v899
      %v968 = vunpack.c.l.b16 %v900
      %v969 = vunpack.c.l.b16 %v901
      %v970 = vunpack.c.l.b16 %v902
      %v971 = vunpack.c.l.b16 %v903
      %v972 = vunpack.c.l.b16 %v904
      %v973 = vunpack.c.l.b16 %v905
      %v974 = vunpack.c.l.b16 %v906
      %v975 = vunpack.c.l.b16 %v907
      %v976 = vunpack.c.l.b16 %v908
      %v977 = vunpack.c.l.b16 %v909
      %v978 = vpack.c.b16 %v955, %v954
      %v979 = vpack.c.b16 %v957, %v956
      %v980 = vpack.c.b16 %v959, %v958
      %v981 = vpack.c.b16 %v961, %v960
      %v982 = vpack.c.b16 %v963, %v962
      %v983 = vpack.c.b16 %v965, %v964
      %v984 = vpack.c.b16 %v967, %v966
      %v985 = vpack.c.b16 %v969, %v968
      %v986 = vpack.c.b16 %v971, %v970
      %v987 = vpack.c.b16 %v973, %v972
      %v988 = vpack.c.b16 %v975, %v974
      %v989 = vpack.c.b16 %v977, %v976
      %v1003 = vsel %vm438, %v923, 0
      %v1006 = vsel %vm438, %v927, 0
      %1008 = vmatpush.bf16.msra.mxu0 %v985
      %1009 = vmatpush.bf16.msra.mxu0 %v984
      %1010 = vmatpush.bf16.msra.mxu0 %v983
      %1011 = vmatpush.bf16.msra.mxu0 %v982
      %1012 = vmatpush.bf16.msra.mxu0 %v981
      %1013 = vmatpush.bf16.msra.mxu0 %v980
      %1014 = vmatpush.bf16.msra.mxu0 %v979
      %1015 = vmatpush.bf16.msra.mxu0 %v978
      %1016 = vmatmul.bf16.gmra.mxu0 %v920
      %v1017 = vpop.f32.mrf.mxu0
      %v1018 = vadd.f32 %v912, %v1017
      %v1019 = vpop.f32.mrf.mxu0
      %v1020 = vadd.f32 %v912, %v1019
      %1021 = vmatmul.bf16.gmra.mxu0 %v925
      %v1022 = vpop.f32.mrf.mxu0
      %v1023 = vadd.f32 %v912, %v1022
      %v1024 = vpop.f32.mrf.mxu0
      %v1025 = vadd.f32 %v912, %v1024
      %1026 = vdwg.mxu0
      %1027 = vmatpush.bf16.msra.mxu0 0
      %1028 = vmatpush.bf16.msra.mxu0 0
      %1029 = vmatpush.bf16.msra.mxu0 0
      %1030 = vmatpush.bf16.msra.mxu0 0
      %1031 = vmatpush.bf16.msra.mxu0 %v989
      %1032 = vmatpush.bf16.msra.mxu0 %v988
      %1033 = vmatpush.bf16.msra.mxu0 %v987
      %1034 = vmatpush.bf16.msra.mxu0 %v986
      %1035 = vmatmul.bf16.gmra.mxu0 %v1003
      %v1036 = vpop.f32.mrf.mxu0
      %v1037 = vadd.f32 %v1018, %v1036
      %v1038 = vpop.f32.mrf.mxu0
      %v1039 = vadd.f32 %v1020, %v1038
      %1040 = vmatmul.bf16.gmra.mxu0 %v1006
      %v1041 = vpop.f32.mrf.mxu0
      %v1042 = vadd.f32 %v1023, %v1041
      %v1043 = vpop.f32.mrf.mxu0
      %v1044 = vadd.f32 %v1025, %v1043
      %1045 = vdwg.mxu0
      %v1046 = vadd.f32 %v1037, %v331
      %v1047 = vadd.f32 %v1039, %v333
      %v1048 = vadd.f32 %v1042, %v336
      %v1049 = vadd.f32 %v1044, %v338
      %v1050 = vtanh.pop %v1046
      %v1051 = vtanh.pop %v1047
      %v1052 = vtanh.pop %v1048
      %v1053 = vtanh.pop %v1049
      %v1054 = vxor.u32 %v1046, 2147483648
      %v1055 = vxor.u32 %v1047, 2147483648
      %v1056 = vxor.u32 %v1048, 2147483648
      %v1057 = vxor.u32 %v1049, 2147483648
      %v1058 = vmul.f32 %v1054, 1.442695
      %v1059 = vpow.pop %v1058
      %v1060 = vmul.f32 %v1055, 1.442695
      %v1061 = vpow.pop %v1060
      %v1062 = vmul.f32 %v1056, 1.442695
      %v1063 = vpow.pop %v1062
      %v1064 = vmul.f32 %v1057, 1.442695
      %v1065 = vpow.pop %v1064
      %v1066 = vadd.f32 %v1059, 1.0
      %v1067 = vadd.f32 %v1061, 1.0
      %v1068 = vadd.f32 %v1063, 1.0
      %v1069 = vadd.f32 %v1065, 1.0
      %v1070 = vrcp.pop %v1066
      %v1071 = vmul.f32 %v1066, %v1070
      %v1072 = vsub.f32 1.0, %v1071
      %v1073 = vmul.f32 %v1070, %v1072
      %v1074 = vadd.f32 %v1070, %v1073
      %vm1075 = vweird.f32 %v1066
      %vm1076 = vweird.f32 %v1070
      %vm1077 = vmor %vm1075, %vm1076
      %v1078 = vsel %vm1077, %v1070, %v1074
      %v1079 = vand.u32 2147483647, %v1066
      %vm1080 = vcmp.eq.f32.partialorder %v1079, 8.507059e+37
      %v1081 = vand.u32 %v1066, 2147483648
      %v1082 = vor.u32 1.1754944e-38, %v1081
      %v1083 = vsel %vm1080, %v1082, %v1078
      %v1084 = vmul.f32 1.0, %v1083
      %v1085 = vrcp.pop %v1067
      %v1086 = vmul.f32 %v1067, %v1085
      %v1087 = vsub.f32 1.0, %v1086
      %v1088 = vmul.f32 %v1085, %v1087
      %v1089 = vadd.f32 %v1085, %v1088
      %vm1090 = vweird.f32 %v1067
      %vm1091 = vweird.f32 %v1085
      %vm1092 = vmor %vm1090, %vm1091
      %v1093 = vsel %vm1092, %v1085, %v1089
      %v1094 = vand.u32 2147483647, %v1067
      %vm1095 = vcmp.eq.f32.partialorder %v1094, 8.507059e+37
      %v1096 = vand.u32 %v1067, 2147483648
      %v1097 = vor.u32 1.1754944e-38, %v1096
      %v1098 = vsel %vm1095, %v1097, %v1093
      %v1099 = vmul.f32 1.0, %v1098
      %v1100 = vrcp.pop %v1068
      %v1101 = vmul.f32 %v1068, %v1100
      %v1102 = vsub.f32 1.0, %v1101
      %v1103 = vmul.f32 %v1100, %v1102
      %v1104 = vadd.f32 %v1100, %v1103
      %vm1105 = vweird.f32 %v1068
      %vm1106 = vweird.f32 %v1100
      %vm1107 = vmor %vm1105, %vm1106
      %v1108 = vsel %vm1107, %v1100, %v1104
      %v1109 = vand.u32 2147483647, %v1068
      %vm1110 = vcmp.eq.f32.partialorder %v1109, 8.507059e+37
      %v1111 = vand.u32 %v1068, 2147483648
      %v1112 = vor.u32 1.1754944e-38, %v1111
      %v1113 = vsel %vm1110, %v1112, %v1108
      %v1114 = vmul.f32 1.0, %v1113
      %v1115 = vrcp.pop %v1069
      %v1116 = vmul.f32 %v1069, %v1115
      %v1117 = vsub.f32 1.0, %v1116
      %v1118 = vmul.f32 %v1115, %v1117
      %v1119 = vadd.f32 %v1115, %v1118
      %vm1120 = vweird.f32 %v1069
      %vm1121 = vweird.f32 %v1115
      %vm1122 = vmor %vm1120, %vm1121
      %v1123 = vsel %vm1122, %v1115, %v1119
      %v1124 = vand.u32 2147483647, %v1069
      %vm1125 = vcmp.eq.f32.partialorder %v1124, 8.507059e+37
      %v1126 = vand.u32 %v1069, 2147483648
      %v1127 = vor.u32 1.1754944e-38, %v1126
      %v1128 = vsel %vm1125, %v1127, %v1123
      %v1129 = vmul.f32 1.0, %v1128
      %1134 = vrot.lane.b32.xlu0 %v1084, 64
      %v1135 = vpop.permute.xlu0 %1134
      %1136 = vrot.lane.b32.xlu0 %v1099, 64
      %v1137 = vpop.permute.xlu0 %1136
      %1138 = vrot.lane.b32.xlu0 %v1114, 64
      %v1139 = vpop.permute.xlu0 %1138
      %1140 = vrot.lane.b32.xlu0 %v1129, 64
      %v1141 = vpop.permute.xlu0 %1140
      %v1146 = vmul.f32 %v1050, %v1135
      %v1147 = vmul.f32 %v1051, %v1137
      %v1148 = vmul.f32 %v1052, %v1139
      %v1149 = vmul.f32 %v1053, %v1141
      %v1150 = vpack.c.bf16 %v1147, %v1146
      %v1151 = vpack.c.bf16 %v1149, %v1148
      %v1152 = vld [vmem:[%s1 + $0x2d0] sm:$0xf]
      %v1153 = vld [vmem:[%s1 + $0x2dc] sm:$0xf]
      %v1154 = vld [vmem:[%s1 + $0x2e8] sm:$0xf]
      %v1155 = vld [vmem:[%s1 + $0x2f4] sm:$0xf]
      %v1156 = vld [vmem:[%s1 + $0x300] sm:$0xf]
      %v1157 = vld [vmem:[%s1 + $0x30c] sm:$0xf]
      %v1158 = vld [vmem:[%s1 + $0x318] sm:$0xf]
      %v1159 = vld [vmem:[%s1 + $0x324] sm:$0xf]
      %v1160 = vld [vmem:[%s2 + $0x6] sm:$0x1]
      %v1162 = vperm.slane %v1160, 0
      %v1172 = vunpack.c.l.b16 %v1152
      %v1173 = vunpack.c.l.b16 %v1153
      %v1174 = vunpack.c.l.b16 %v1154
      %v1175 = vunpack.c.l.b16 %v1155
      %v1176 = vunpack.c.l.b16 %v1156
      %v1177 = vunpack.c.l.b16 %v1157
      %v1178 = vunpack.c.l.b16 %v1158
      %v1179 = vunpack.c.l.b16 %v1159
      %v1180 = vpack.c.b16 %v1173, %v1172
      %v1181 = vpack.c.b16 %v1175, %v1174
      %v1182 = vpack.c.b16 %v1177, %v1176
      %v1183 = vpack.c.b16 %v1179, %v1178
      %v1189 = vsel %vm438, %v1150, 0
      %v1192 = vsel %vm438, %v1151, 0
      %1194 = vmatpush.bf16.msra.mxu0 0
      %1195 = vmatpush.bf16.msra.mxu0 0
      %1196 = vmatpush.bf16.msra.mxu0 0
      %1197 = vmatpush.bf16.msra.mxu0 0
      %1198 = vmatpush.bf16.msra.mxu0 %v1183
      %1199 = vmatpush.bf16.msra.mxu0 %v1182
      %1200 = vmatpush.bf16.msra.mxu0 %v1181
      %1201 = vmatpush.bf16.msra.mxu0 %v1180
      %1202 = vmatmul.bf16.gmra.mxu0 %v1189
      %v1203 = vpop.f32.mrf.mxu0
      %v1204 = vadd.f32 %v1162, %v1203
      %v1205 = vpop.f32.mrf.mxu0
      %v1206 = vadd.f32 %v1162, %v1205
      %1207 = vmatmul.bf16.gmra.mxu0 %v1192
      %v1208 = vpop.f32.mrf.mxu0
      %v1209 = vadd.f32 %v1162, %v1208
      %v1210 = vpop.f32.mrf.mxu0
      %v1211 = vadd.f32 %v1162, %v1210
      %1212 = vdwg.mxu0
      %1217 = vrot.lane.b32.xlu0 %v1204, 64
      %v1218 = vpop.permute.xlu0 %1217
      %1219 = vrot.lane.b32.xlu0 %v1206, 64
      %v1220 = vpop.permute.xlu0 %1219
      %1221 = vrot.lane.b32.xlu0 %v1209, 64
      %v1222 = vpop.permute.xlu0 %1221
      %1223 = vrot.lane.b32.xlu0 %v1211, 64
      %v1224 = vpop.permute.xlu0 %1223
      %v1229 = vadd.f32 %v815, %v1218
      %v1230 = vadd.f32 %v816, %v1220
      %v1231 = vadd.f32 %v817, %v1222
      %v1232 = vadd.f32 %v818, %v1224
      %v1233 = vpack.c.bf16 %v1230, %v1229
      %v1234 = vpack.c.bf16 %v1232, %v1231
      %v1235 = vld [vmem:[%s1 + $0x330] sm:$0xf]
      %v1236 = vld [vmem:[%s1 + $0x33c] sm:$0xf]
      %v1237 = vld [vmem:[%s1 + $0x348] sm:$0xf]
      %v1238 = vld [vmem:[%s1 + $0x354] sm:$0xf]
      %v1239 = vld [vmem:[%s1 + $0x360] sm:$0xf]
      %v1240 = vld [vmem:[%s1 + $0x36c] sm:$0xf]
      %v1241 = vld [vmem:[%s1 + $0x378] sm:$0xf]
      %v1242 = vld [vmem:[%s1 + $0x384] sm:$0xf]
      %v1243 = vld [vmem:[%s2 + $0x7] sm:$0x1]
      %v1245 = vperm.slane %v1243, 0
      %1249 = vrot.lane.b32.xlu0 %v1233, 64
      %v1250 = vpop.permute.xlu0 %1249
      %1251 = vrot.lane.b32.xlu0 %v1234, 64
      %v1252 = vpop.permute.xlu0 %1251
      %v1261 = vunpack.c.l.b16 %v1235
      %v1262 = vunpack.c.l.b16 %v1236
      %v1263 = vunpack.c.l.b16 %v1237
      %v1264 = vunpack.c.l.b16 %v1238
      %v1265 = vunpack.c.l.b16 %v1239
      %v1266 = vunpack.c.l.b16 %v1240
      %v1267 = vunpack.c.l.b16 %v1241
      %v1268 = vunpack.c.l.b16 %v1242
      %v1269 = vpack.c.b16 %v1262, %v1261
      %v1270 = vpack.c.b16 %v1264, %v1263
      %v1271 = vpack.c.b16 %v1266, %v1265
      %v1272 = vpack.c.b16 %v1268, %v1267
      %v1278 = vsel %vm438, %v1250, 0
      %v1281 = vsel %vm438, %v1252, 0
      %1283 = vmatpush.bf16.msra.mxu0 0
      %1284 = vmatpush.bf16.msra.mxu0 0
      %1285 = vmatpush.bf16.msra.mxu0 0
      %1286 = vmatpush.bf16.msra.mxu0 0
      %1287 = vmatpush.bf16.msra.mxu0 %v1272
      %1288 = vmatpush.bf16.msra.mxu0 %v1271
      %1289 = vmatpush.bf16.msra.mxu0 %v1270
      %1290 = vmatpush.bf16.msra.mxu0 %v1269
      %1291 = vmatmul.bf16.gmra.mxu0 %v1278
      %v1292 = vpop.f32.mrf.mxu0
      %v1293 = vpop.f32.mrf.mxu0
      %v1294 = vadd.f32 %v1245, %v1293
      %1295 = vmatmul.bf16.gmra.mxu0 %v1281
      %v1296 = vpop.f32.mrf.mxu0
      %v1297 = vadd.f32 %v1245, %v1296
      %v1298 = vpop.f32.mrf.mxu0
      %1299 = vdwg.mxu0
      %1300 = vst [vmem:[%s206] sm:$0xff] %v1294
      %1301 = vst [vmem:[%s206 + $0x8] sm:$0xff] %v1297
      %s1302 = smul.u32 2, %s19
      %p1303 = scmp.lt.s32.totalorder %s18, 1
      %s1304 = scalar_select %p1303, %s18, 1
      %p1305 = scmp.lt.s32.totalorder %s1302, 1
      %s1306 = scalar_select %p1305, %s1302, 1
      %s1307 = smul.addr %s1304, 2
      %s1308 = sadd.s32 %s1306, %s1307
      %s1309 = smul.addr %s1308, 8
      %s1310 = scalar_lea.vmem %s3, %s1309
      // Predicated region
      $region33: #{wn_forward.1} parent=31 // pred_check
        %p1311 = pneg %p116
      $region34: #{wn_forward.1} parent=31 // pred_check_branch
        %1313 = sbr.rel (%p1311) target = $region36
      $region35: #{wn_forward.1} parent=31 // pred_region
        %s1314 = smul.u32 2, %s19
      $region36: #{wn_forward.1} parent=31 // pred_fallthru
        _
    $region32: #{wn_forward.1} parent=5 // pred_fallthru
      _
    %p1315 = scmp.le.s32.totalorder 2, %s9
    // Predicated region
    $region37: #{wn_forward.1} parent=5 // pred_check
      %p1316 = pneg %p1315
    $region38: #{wn_forward.1} parent=5 // pred_check_branch
      %1318 = sbr.rel (%p1316) target = $region40
    $region39: #{wn_forward.1} parent=5 // pred_region
      %s1319 = ssub.s32 %s9, 2
      // Predicated region
      $region41: #{wn_forward.1} parent=39 // pred_check
        %p1320 = pneg %p122
      $region42: #{wn_forward.1} parent=39 // pred_check_branch
        %1322 = sbr.rel (%p1320) target = $region44
      $region43: #{wn_forward.1} parent=39 // pred_region
        %s1323 = smul.u32 2, %s21
        %p1324 = scmp.lt.s32.totalorder %s20, 1
        %s1325 = scalar_select %p1324, %s20, 1
        %p1326 = scmp.lt.s32.totalorder %s1323, 1
        %s1327 = scalar_select %p1326, %s1323, 1
        %s1328 = smul.addr %s1325, 2
        %s1329 = sadd.s32 %s1327, %s1328
        %s1330 = smul.addr %s1329, 8
        %s1331 = scalar_lea.vmem %s3, %s1330
      $region44: #{wn_forward.1} parent=39 // pred_fallthru
        _
    $region40: #{wn_forward.1} parent=5 // pred_fallthru
      _
  $region6: #{wn_forward.1} parent=0 // loop_footer
    %s13 = sadd.s32 1, %s9
  $region7: #{wn_forward.1} parent=0 // loop_footer_branch
    %8 = sbr.rel target = $region3
  $region8: #{wn_forward.1} parent=0 // loop_exit
    _

</llo_original>
